<compile_context>
chip_gen: v7x
topology: tpu7x:2x2x1
jax: 0.10.0
libtpu: 0.0.40
codegen_flags: <defaults>
</compile_context>

<pallas_src>
import math

import jax
import jax.numpy as jnp
import numpy as np
from jax.experimental import pallas as pl
from jax.experimental.pallas import tpu as pltpu


# --------------------------------------------------------------------------
# In-kernel helpers
# --------------------------------------------------------------------------
def _rmsnorm(v, w, eps=1e-5):
    # f32 RMSNorm; rsqrt maps to the EUP slot on TPU.
    ms = jnp.mean(v * v, axis=-1, keepdims=True)
    return v * jax.lax.rsqrt(ms + eps) * w


# --------------------------------------------------------------------------
# Kernel 1: RMSNorm1 + fused QKV projection + RoPE   grid = (B, S // TS)
# --------------------------------------------------------------------------
def qkv_rope_kernel(x_ref, wqkv_ref, n1_ref, cos_ref, sneg_ref, spos_ref,
                    q_ref, k_ref, v_ref):
    H = q_ref.shape[1]
    d_k = q_ref.shape[3]
    D = H * d_k
    TS = x_ref.shape[1]

    x = x_ref[0]                                             # (TS, D)  f32
    h = _rmsnorm(x, n1_ref[0]).astype(jnp.bfloat16)
    qkv = jnp.dot(h, wqkv_ref[...],
                  preferred_element_type=jnp.float32)        # (TS, 3D) f32

    # RoPE tables are (TS, d_k); broadcast over heads in-kernel (H x less HBM
    # table traffic than (TS, D) tables).
    cos = cos_ref[...][:, None, :]                           # (TS, 1, d_k)
    sneg = sneg_ref[...][:, None, :]                         # -sin @ even cols, 0 @ odd
    spos = spos_ref[...][:, None, :]                         # +sin @ odd cols,  0 @ even

    def rope3(t):
        # Interleaved-pair RoPE on (TS, H, d_k):
        #   out[2i]   = t[2i]*cos_i - t[2i+1]*sin_i
        #   out[2i+1] = t[2i]*sin_i + t[2i+1]*cos_i
        # Roll wrap-around elements always multiply a zero sin-table entry:
        # roll(-1) wraps into column d_k-1 (odd, sneg==0); roll(+1) wraps into
        # column 0 (even, spos==0), so the result is exact per head.
        # TODO(synk): pltpu.roll would guarantee the XLU lane-rotate slot.
        up = jnp.roll(t, -1, axis=2)
        dn = jnp.roll(t, 1, axis=2)
        return t * cos + up * sneg + dn * spos

    scale = 1.0 / math.sqrt(d_k)
    q3 = rope3(qkv[:, 0:D].reshape(TS, H, d_k)) * scale      # fold 1/sqrt(d_k) into q
    k3 = rope3(qkv[:, D:2 * D].reshape(TS, H, d_k))
    v3 = qkv[:, 2 * D:3 * D].reshape(TS, H, d_k)

    # One transposed, lane-dense store per tensor (no per-head masked stores).
    q_ref[0] = jnp.transpose(q3, (1, 0, 2)).astype(q_ref.dtype)
    k_ref[0] = jnp.transpose(k3, (1, 0, 2)).astype(k_ref.dtype)
    v_ref[0] = jnp.transpose(v3, (1, 0, 2)).astype(v_ref.dtype)
    # TODO(synk): for d_k < 128, pack two heads per 128-lane tile to avoid
    # lane padding of the (.., d_k)-minor K/V layout.


# --------------------------------------------------------------------------
# Kernel 2: flash (kv-tiled, online-softmax) causal attention + Wo + residual
#           grid = (B, S // TQ, S // TK)   (kv axis = "arbitrary")
# --------------------------------------------------------------------------
def flash_attn_kernel(x_ref, q_ref, k_ref, v_ref, wo_ref, o_ref,
                      m_sc, l_sc, acc_sc):
    TQ = q_ref.shape[2]
    TK = k_ref.shape[2]
    kv = pl.program_id(2)
    q0 = pl.program_id(1) * TQ
    k0 = kv * TK

    @pl.when(kv == 0)
    def _():
        m_sc[...] = jnp.full_like(m_sc, -jnp.inf)
        l_sc[...] = jnp.zeros_like(l_sc)
        acc_sc[...] = jnp.zeros_like(acc_sc)

    # Skip kv tiles that are entirely above the causal diagonal.
    # TODO(synk): also skip their K/V DMA via a scalar-prefetch kv block map.
    @pl.when(k0 <= q0 + TQ - 1)
    def _():
        q = q_ref[0]                                         # (H, TQ, d_k) bf16, pre-scaled
        k = k_ref[0]                                         # (H, TK, d_k) bf16
        v = v_ref[0]                                         # (H, TK, d_k) bf16

        s = jnp.einsum('hqd,hkd->hqk', q, k,
                       preferred_element_type=jnp.float32)   # (H, TQ, TK) f32
        # Causal mask from two small (TQ, TK) iotas, broadcast over heads.
        row = jax.lax.broadcasted_iota(jnp.int32, (TQ, TK), 0) + q0
        col = jax.lax.broadcasted_iota(jnp.int32, (TQ, TK), 1) + k0
        s = jnp.where((row >= col)[None, :, :], s, jnp.float32(-1e30))

        m_prev = m_sc[...]
        m_new = jnp.maximum(m_prev, jnp.max(s, axis=-1, keepdims=True))
        alpha = jnp.exp(m_prev - m_new)
        p = jnp.exp(s - m_new)
        l_sc[...] = alpha * l_sc[...] + jnp.sum(p, axis=-1, keepdims=True)
        acc_sc[...] = alpha * acc_sc[...] + jnp.einsum(
            'hqk,hkd->hqd', p.astype(jnp.bfloat16), v,
            preferred_element_type=jnp.float32)
        m_sc[...] = m_new

    @pl.when(kv == pl.num_programs(2) - 1)
    def _():
        H, TQq, dk = acc_sc.shape
        inv_l = pl.reciprocal(l_sc[...], approx=True)        # EUP, frees VALU
        attn_h = acc_sc[...] * inv_l                         # (H, TQ, d_k) f32
        attn = jnp.transpose(attn_h, (1, 0, 2)).reshape(TQq, H * dk)   # (TQ, D)
        # Single full-D-contraction output projection on the MXU.
        proj = jnp.dot(attn.astype(jnp.bfloat16), wo_ref[...],
                       preferred_element_type=jnp.float32)
        o_ref[0] = x_ref[0] + proj                           # residual 1 -> x2


# --------------------------------------------------------------------------
# Kernel 3: RMSNorm2 + d_ff-chunked SwiGLU FFN + residual
#           grid = (B, S // TQ, d_ff // TF)   (d_ff axis = "arbitrary")
# --------------------------------------------------------------------------
def ffn_kernel(x2_ref, n2_ref, w1_ref, w3_ref, w2_ref, o_ref, h2_sc, acc_sc):
    f = pl.program_id(2)

    @pl.when(f == 0)
    def _():
        h2_sc[...] = _rmsnorm(x2_ref[0], n2_ref[0]).astype(jnp.bfloat16)
        acc_sc[...] = jnp.zeros_like(acc_sc)

    h2 = h2_sc[...]                                          # (TQ, D) bf16
    z1 = jnp.dot(h2, w1_ref[...], preferred_element_type=jnp.float32)   # (TQ, TF)
    z3 = jnp.dot(h2, w3_ref[...], preferred_element_type=jnp.float32)   # (TQ, TF)
    g = (z1 * jax.nn.sigmoid(z1) * z3).astype(jnp.bfloat16)             # SwiGLU chunk
    acc_sc[...] += jnp.dot(g, w2_ref[...], preferred_element_type=jnp.float32)

    @pl.when(f == pl.num_programs(2) - 1)
    def _():
        o_ref[0] = x2_ref[0] + acc_sc[...]                   # residual 2


# --------------------------------------------------------------------------
# Wrapper
# --------------------------------------------------------------------------
def transformer_block(x, params, *, num_heads, theta=10000.0,
                      s_tile=256, q_tile=128, kv_tile=256, ff_tile=512):
    """x: (B, S, D) float32."""
    B, S, D = x.shape
    assert D % num_heads == 0
    d_k = D // num_heads
    assert d_k % 2 == 0, "RoPE requires even d_k"

    f32, bf16 = jnp.float32, jnp.bfloat16

    TS = min(s_tile, S)
    TQ = min(q_tile, S)
    TK = min(kv_tile, S)
    assert S % TS == 0 and S % TQ == 0 and S % TK == 0, "seq must divide tiles"

    # Weights transposed to (in, out) and cast to bf16 (MXU inputs).
    wqkv_t = params["wqkv"].T.astype(bf16)                   # (D, 3D)
    wo_t = params["wo"].T.astype(bf16)                       # (D, D); rows in (head, d_k) order
    w1_t = params["w1"].T.astype(bf16)                       # (D, d_ff)
    w3_t = params["w3"].T.astype(bf16)                       # (D, d_ff)
    w2_t = params["w2"].T.astype(bf16)                       # (d_ff, D)
    d_ff = w2_t.shape[0]
    TF = min(ff_tile, d_ff)
    assert d_ff % TF == 0
    n1 = params["n1"].reshape(1, D).astype(f32)
    n2 = params["n2"].reshape(1, D).astype(f32)

    # RoPE tables for token_positions = arange(S); per-head width d_k only,
    # with the even/odd sign/select folded into the sin tables.
    inv_freq = 1.0 / theta ** (jnp.arange(0, d_k, 2, dtype=f32) / d_k)   # (d_k/2,)
    ang = jnp.arange(S, dtype=f32)[:, None] * inv_freq[None, :]          # (S, d_k/2)
    cos_t = jnp.repeat(jnp.cos(ang), 2, axis=-1)                         # (S, d_k)
    sin_t = jnp.repeat(jnp.sin(ang), 2, axis=-1)
    even = (jnp.arange(d_k) % 2 == 0)[None, :]
    sneg_t = jnp.where(even, -sin_t, 0.0)
    spos_t = jnp.where(even, 0.0, sin_t)

    # Per-generation VMEM budget: ~75% of physical (v5e/v6e ~96 MiB, v7x ~48 MiB).
    try:
        vmem_cap = int(pltpu.get_tpu_info().vmem_capacity_bytes)
    except Exception:
        vmem_cap = 128 * 1024 * 1024
    vmem_limit = (vmem_cap * 3) // 4

    cparams2d = pltpu.CompilerParams(
        dimension_semantics=("parallel", "parallel"),
        vmem_limit_bytes=vmem_limit)
    cparams3d = pltpu.CompilerParams(
        dimension_semantics=("parallel", "parallel", "arbitrary"),
        vmem_limit_bytes=vmem_limit)

    # TODO(synk): add pipeline_mode=pl.Buffered(1) to the constant-index weight
    # BlockSpecs (wqkv, wo, n1, n2) to halve their VMEM footprint.

    # ---- kernel 1: RMSNorm1 + QKV + RoPE -> head-major bf16 q/k/v ----------
    q_h, k_h, v_h = pl.pallas_call(
        qkv_rope_kernel,
        out_shape=[jax.ShapeDtypeStruct((B, num_heads, S, d_k), bf16)] * 3,
        grid=(B, S // TS),
        in_specs=[
            pl.BlockSpec((1, TS, D), lambda b, si: (b, si, 0)),      # x
            pl.BlockSpec((D, 3 * D), lambda b, si: (0, 0)),          # Wqkv^T (resident)
            pl.BlockSpec((1, D), lambda b, si: (0, 0)),              # norm1 w
            pl.BlockSpec((TS, d_k), lambda b, si: (si, 0)),          # cos
            pl.BlockSpec((TS, d_k), lambda b, si: (si, 0)),          # -sin(even)
            pl.BlockSpec((TS, d_k), lambda b, si: (si, 0)),          # +sin(odd)
        ],
        out_specs=[pl.BlockSpec((1, num_heads, TS, d_k),
                                lambda b, si: (b, 0, si, 0))] * 3,
        compiler_params=cparams2d,
    )(x, wqkv_t, n1, cos_t, sneg_t, spos_t)

    # ---- kernel 2: flash causal attention + Wo + residual 1 ----------------
    x2 = pl.pallas_call(
        flash_attn_kernel,
        out_shape=jax.ShapeDtypeStruct((B, S, D), f32),
        grid=(B, S // TQ, S // TK),
        in_specs=[
            pl.BlockSpec((1, TQ, D), lambda b, q, k: (b, q, 0)),                  # x
            pl.BlockSpec((1, num_heads, TQ, d_k), lambda b, q, k: (b, 0, q, 0)),  # q tile
            pl.BlockSpec((1, num_heads, TK, d_k), lambda b, q, k: (b, 0, k, 0)),  # K tile
            pl.BlockSpec((1, num_heads, TK, d_k), lambda b, q, k: (b, 0, k, 0)),  # V tile
            pl.BlockSpec((D, D), lambda b, q, k: (0, 0)),                         # Wo^T (resident)
        ],
        out_specs=pl.BlockSpec((1, TQ, D), lambda b, q, k: (b, q, 0)),
        scratch_shapes=[
            pltpu.VMEM((num_heads, TQ, 1), f32),      # running max
            pltpu.VMEM((num_heads, TQ, 1), f32),      # running denom
            pltpu.VMEM((num_heads, TQ, d_k), f32),    # running PV accumulator
        ],
        compiler_params=cparams3d,
    )(x, q_h, k_h, v_h, wo_t)

    # ---- kernel 3: RMSNorm2 + d_ff-chunked SwiGLU FFN + residual 2 ---------
    out = pl.pallas_call(
        ffn_kernel,
        out_shape=jax.ShapeDtypeStruct((B, S, D), f32),
        grid=(B, S // TQ, d_ff // TF),
        in_specs=[
            pl.BlockSpec((1, TQ, D), lambda b, q, f: (b, q, 0)),     # x2
            pl.BlockSpec((1, D), lambda b, q, f: (0, 0)),            # norm2 w
            pl.BlockSpec((D, TF), lambda b, q, f: (0, f)),           # W1^T chunk
            pl.BlockSpec((D, TF), lambda b, q, f: (0, f)),           # W3^T chunk
            pl.BlockSpec((TF, D), lambda b, q, f: (f, 0)),           # W2^T chunk
        ],
        out_specs=pl.BlockSpec((1, TQ, D), lambda b, q, f: (b, q, 0)),
        scratch_shapes=[
            pltpu.VMEM((TQ, D), bf16),    # h2 = RMSNorm2(x2), reused per chunk
            pltpu.VMEM((TQ, D), f32),     # FFN accumulator
        ],
        compiler_params=cparams3d,
    )(x2, n2, w1_t, w3_t, w2_t)

    return out


# --------------------------------------------------------------------------
# Pure-JAX reference (f32) for validation
# --------------------------------------------------------------------------
def reference_block(x, params, *, num_heads, theta=10000.0):
    B, S, D = x.shape
    d_k = D // num_heads

    def rms(v, w):
        return v / jnp.sqrt(jnp.mean(v * v, -1, keepdims=True) + 1e-5) * w

    freqs = 1.0 / theta ** (jnp.arange(0, d_k, 2, dtype=jnp.float32) / d_k)
    ang = jnp.arange(S, dtype=jnp.float32)[:, None] * freqs[None, :]
    cosv, sinv = jnp.cos(ang), jnp.sin(ang)

    def rope(t):  # t: (B, H, S, d_k)
        te = t[..., 0::2]
        to = t[..., 1::2]
        oe = te * cosv - to * sinv
        oo = te * sinv + to * cosv
        return jnp.stack([oe, oo], axis=-1).reshape(t.shape)

    h = rms(x, params["n1"])
    qkv = h @ params["wqkv"].T                                  # (B, S, 3D)
    qkv = qkv.reshape(B, S, 3, num_heads, d_k)
    q = jnp.transpose(qkv[:, :, 0], (0, 2, 1, 3))
    k = jnp.transpose(qkv[:, :, 1], (0, 2, 1, 3))
    v = jnp.transpose(qkv[:, :, 2], (0, 2, 1, 3))
    q, k = rope(q), rope(k)
    s = jnp.einsum("bhqd,bhkd->bhqk", q, k) / math.sqrt(d_k)
    mask = jnp.tril(jnp.ones((S, S), bool))
    s = jnp.where(mask, s, -jnp.inf)
    p = jax.nn.softmax(s, axis=-1)
    a = jnp.einsum("bhqk,bhkd->bhqd", p, v)
    a = jnp.transpose(a, (0, 2, 1, 3)).reshape(B, S, D)
    x2 = x + a @ params["wo"].T
    h2 = rms(x2, params["n2"])
    w1x = h2 @ params["w1"].T
    w3x = h2 @ params["w3"].T
    ff = (w1x * jax.nn.sigmoid(w1x) * w3x) @ params["w2"].T
    return x2 + ff


if __name__ == "__main__":
    B, S, D, H = 2, 8, 32, 4
    d_ff = ((int(8 / 3 * D)) + 63) // 64 * 64  # 128

    key = jax.random.PRNGKey(0)
    ks = jax.random.split(key, 8)

    def init(k, out_f, in_f):
        std = math.sqrt(2.0 / (in_f + out_f))
        return (std * jax.random.normal(k, (out_f, in_f))).astype(jnp.float32)

    params = {
        "wqkv": init(ks[0], 3 * D, D),
        "wo": init(ks[1], D, D),
        "w1": init(ks[2], d_ff, D),
        "w2": init(ks[3], D, d_ff),
        "w3": init(ks[4], d_ff, D),
        "n1": jnp.ones((D,), jnp.float32),
        "n2": jnp.ones((D,), jnp.float32),
    }

    x = jax.random.normal(ks[5], (B, S, D), dtype=jnp.float32)

    out = transformer_block(x, params, num_heads=H)
    out = jax.block_until_ready(out)

    ref = jax.block_until_ready(reference_block(x, params, num_heads=H))
    # bf16 MXU inputs (f32 accumulation) + approx reciprocal -> relaxed tolerance.
    np.testing.assert_allclose(np.asarray(out), np.asarray(ref),
                               rtol=5e-2, atol=5e-2)
    assert np.isfinite(np.asarray(out)).all()
    print("KERNEL_OK")
</pallas_src>

<mosaic_0001>
module attributes {stable_mosaic.version = 11 : i64} {
  func.func @qkv_rope_kernel(%arg0: i32, %arg1: i32, %arg2: memref<1x8x32xf32, #tpu.memory_space<vmem>>, %arg3: memref<32x96xbf16, #tpu.memory_space<vmem>>, %arg4: memref<1x32xf32, #tpu.memory_space<vmem>>, %arg5: memref<8x8xf32, #tpu.memory_space<vmem>>, %arg6: memref<8x8xf32, #tpu.memory_space<vmem>>, %arg7: memref<8x8xf32, #tpu.memory_space<vmem>>, %arg8: memref<1x4x8x8xbf16, #tpu.memory_space<vmem>>, %arg9: memref<1x4x8x8xbf16, #tpu.memory_space<vmem>>, %arg10: memref<1x4x8x8xbf16, #tpu.memory_space<vmem>>) attributes {dimension_semantics = [#tpu.dimension_semantics<parallel>, #tpu.dimension_semantics<parallel>], iteration_bounds = array<i64: 2, 1>, scalar_prefetch = 0 : i64, scratch_operands = 0 : i64, tpu.core_type = #tpu.core_type<tc>, window_params = [{transform_indices = @transform_0, window_bounds = array<i64: 1, 8, 32>}, {pipeline_mode = #tpu.pipeline_mode<synchronous>, transform_indices = @transform_1, window_bounds = array<i64: 32, 96>}, {pipeline_mode = #tpu.pipeline_mode<synchronous>, transform_indices = @transform_2, window_bounds = array<i64: 1, 32>}, {transform_indices = @transform_3, window_bounds = array<i64: 8, 8>}, {transform_indices = @transform_4, window_bounds = array<i64: 8, 8>}, {transform_indices = @transform_5, window_bounds = array<i64: 8, 8>}, {transform_indices = @transform_6, window_bounds = array<i64: 1, 4, 8, 8>}, {transform_indices = @transform_7, window_bounds = array<i64: 1, 4, 8, 8>}, {transform_indices = @transform_8, window_bounds = array<i64: 1, 4, 8, 8>}]} {
    %c0 = arith.constant 0 : index
    %c0_0 = arith.constant 0 : index
    %c0_1 = arith.constant 0 : index
    %0 = vector.load %arg2[%c0, %c0_0, %c0_1] : memref<1x8x32xf32, #tpu.memory_space<vmem>>, vector<1x8x32xf32>
    %1 = vector.shape_cast %0 : vector<1x8x32xf32> to vector<8x32xf32>
    %c0_2 = arith.constant 0 : index
    %c0_3 = arith.constant 0 : index
    %2 = vector.load %arg4[%c0_2, %c0_3] : memref<1x32xf32, #tpu.memory_space<vmem>>, vector<1x32xf32>
    %3 = vector.shape_cast %2 : vector<1x32xf32> to vector<32xf32>
    %4 = arith.mulf %1, %1 : vector<8x32xf32>
    %cst = arith.constant dense<0.000000e+00> : vector<8xf32>
    %5 = vector.multi_reduction <add>, %4, %cst [1] : vector<8x32xf32> to vector<8xf32>
    %6 = vector.shape_cast %5 : vector<8xf32> to vector<8x1xf32>
    %cst_4 = arith.constant 3.200000e+01 : f32
    %7 = vector.broadcast %cst_4 : f32 to vector<8x1xf32>
    %8 = arith.divf %6, %7 : vector<8x1xf32>
    %cst_5 = arith.constant 9.99999974E-6 : f32
    %9 = vector.broadcast %cst_5 : f32 to vector<8x1xf32>
    %10 = arith.addf %8, %9 : vector<8x1xf32>
    %11 = math.rsqrt %10 : vector<8x1xf32>
    %12 = vector.broadcast %11 : vector<8x1xf32> to vector<8x32xf32>
    %13 = arith.mulf %1, %12 : vector<8x32xf32>
    %14 = vector.shape_cast %3 : vector<32xf32> to vector<1x32xf32>
    %15 = vector.broadcast %14 : vector<1x32xf32> to vector<8x32xf32>
    %16 = arith.mulf %13, %15 : vector<8x32xf32>
    %17 = arith.truncf %16 : vector<8x32xf32> to vector<8x32xbf16>
    %c0_6 = arith.constant 0 : index
    %c0_7 = arith.constant 0 : index
    %18 = vector.load %arg3[%c0_6, %c0_7] : memref<32x96xbf16, #tpu.memory_space<vmem>>, vector<32x96xbf16>
    %cst_8 = arith.constant dense<0.000000e+00> : vector<8x96xf32>
    %19 = tpu.matmul %17, %18, %cst_8 {dimension_numbers = #tpu.dot_dimension_numbers<[1], [0], [0], [1], [0, 0, 1, 1], [], []>} : vector<8x32xbf16>, vector<32x96xbf16>, vector<8x96xf32> -> vector<8x96xf32>
    %c0_9 = arith.constant 0 : index
    %c0_10 = arith.constant 0 : index
    %20 = vector.load %arg5[%c0_9, %c0_10] : memref<8x8xf32, #tpu.memory_space<vmem>>, vector<8x8xf32>
    %21 = vector.shape_cast %20 : vector<8x8xf32> to vector<8x1x8xf32>
    %c0_11 = arith.constant 0 : index
    %c0_12 = arith.constant 0 : index
    %22 = vector.load %arg6[%c0_11, %c0_12] : memref<8x8xf32, #tpu.memory_space<vmem>>, vector<8x8xf32>
    %23 = vector.shape_cast %22 : vector<8x8xf32> to vector<8x1x8xf32>
    %c0_13 = arith.constant 0 : index
    %c0_14 = arith.constant 0 : index
    %24 = vector.load %arg7[%c0_13, %c0_14] : memref<8x8xf32, #tpu.memory_space<vmem>>, vector<8x8xf32>
    %25 = vector.shape_cast %24 : vector<8x8xf32> to vector<8x1x8xf32>
    %26 = vector.extract_strided_slice %19 {offsets = [0, 0], sizes = [8, 32], strides = [1, 1]} : vector<8x96xf32> to vector<8x32xf32>
    %27 = vector.shape_cast %26 : vector<8x32xf32> to vector<8x4x8xf32>
    %28 = vector.extract_strided_slice %27 {offsets = [0, 0, 1], sizes = [8, 4, 7], strides = [1, 1, 1]} : vector<8x4x8xf32> to vector<8x4x7xf32>
    %29 = vector.extract_strided_slice %27 {offsets = [0, 0, 0], sizes = [8, 4, 1], strides = [1, 1, 1]} : vector<8x4x8xf32> to vector<8x4x1xf32>
    %30 = tpu.concatenate %28, %29 in 2 : vector<8x4x7xf32>, vector<8x4x1xf32> -> vector<8x4x8xf32>
    %31 = vector.extract_strided_slice %27 {offsets = [0, 0, 7], sizes = [8, 4, 1], strides = [1, 1, 1]} : vector<8x4x8xf32> to vector<8x4x1xf32>
    %32 = vector.extract_strided_slice %27 {offsets = [0, 0, 0], sizes = [8, 4, 7], strides = [1, 1, 1]} : vector<8x4x8xf32> to vector<8x4x7xf32>
    %33 = tpu.concatenate %31, %32 in 2 : vector<8x4x1xf32>, vector<8x4x7xf32> -> vector<8x4x8xf32>
    %34 = vector.broadcast %21 : vector<8x1x8xf32> to vector<8x4x8xf32>
    %35 = arith.mulf %27, %34 : vector<8x4x8xf32>
    %36 = vector.broadcast %23 : vector<8x1x8xf32> to vector<8x4x8xf32>
    %37 = arith.mulf %30, %36 : vector<8x4x8xf32>
    %38 = arith.addf %35, %37 : vector<8x4x8xf32>
    %39 = vector.broadcast %25 : vector<8x1x8xf32> to vector<8x4x8xf32>
    %40 = arith.mulf %33, %39 : vector<8x4x8xf32>
    %41 = arith.addf %38, %40 : vector<8x4x8xf32>
    %cst_15 = arith.constant 0.353553385 : f32
    %42 = vector.broadcast %cst_15 : f32 to vector<8x4x8xf32>
    %43 = arith.mulf %41, %42 : vector<8x4x8xf32>
    %44 = vector.extract_strided_slice %19 {offsets = [0, 32], sizes = [8, 32], strides = [1, 1]} : vector<8x96xf32> to vector<8x32xf32>
    %45 = vector.shape_cast %44 : vector<8x32xf32> to vector<8x4x8xf32>
    %46 = vector.extract_strided_slice %45 {offsets = [0, 0, 1], sizes = [8, 4, 7], strides = [1, 1, 1]} : vector<8x4x8xf32> to vector<8x4x7xf32>
    %47 = vector.extract_strided_slice %45 {offsets = [0, 0, 0], sizes = [8, 4, 1], strides = [1, 1, 1]} : vector<8x4x8xf32> to vector<8x4x1xf32>
    %48 = tpu.concatenate %46, %47 in 2 : vector<8x4x7xf32>, vector<8x4x1xf32> -> vector<8x4x8xf32>
    %49 = vector.extract_strided_slice %45 {offsets = [0, 0, 7], sizes = [8, 4, 1], strides = [1, 1, 1]} : vector<8x4x8xf32> to vector<8x4x1xf32>
    %50 = vector.extract_strided_slice %45 {offsets = [0, 0, 0], sizes = [8, 4, 7], strides = [1, 1, 1]} : vector<8x4x8xf32> to vector<8x4x7xf32>
    %51 = tpu.concatenate %49, %50 in 2 : vector<8x4x1xf32>, vector<8x4x7xf32> -> vector<8x4x8xf32>
    %52 = vector.broadcast %21 : vector<8x1x8xf32> to vector<8x4x8xf32>
    %53 = arith.mulf %45, %52 : vector<8x4x8xf32>
    %54 = vector.broadcast %23 : vector<8x1x8xf32> to vector<8x4x8xf32>
    %55 = arith.mulf %48, %54 : vector<8x4x8xf32>
    %56 = arith.addf %53, %55 : vector<8x4x8xf32>
    %57 = vector.broadcast %25 : vector<8x1x8xf32> to vector<8x4x8xf32>
    %58 = arith.mulf %51, %57 : vector<8x4x8xf32>
    %59 = arith.addf %56, %58 : vector<8x4x8xf32>
    %60 = vector.extract_strided_slice %19 {offsets = [0, 64], sizes = [8, 32], strides = [1, 1]} : vector<8x96xf32> to vector<8x32xf32>
    %61 = vector.shape_cast %60 : vector<8x32xf32> to vector<8x4x8xf32>
    %62 = tpu.transpose %43, [1, 0, 2] : vector<8x4x8xf32> -> vector<4x8x8xf32>
    %63 = arith.truncf %62 : vector<4x8x8xf32> to vector<4x8x8xbf16>
    %c0_16 = arith.constant 0 : index
    %c0_17 = arith.constant 0 : index
    %c0_18 = arith.constant 0 : index
    %c0_19 = arith.constant 0 : index
    %64 = vector.load %arg8[%c0_16, %c0_17, %c0_18, %c0_19] : memref<1x4x8x8xbf16, #tpu.memory_space<vmem>>, vector<1x4x8x8xbf16>
    %65 = vector.shape_cast %64 : vector<1x4x8x8xbf16> to vector<4x8x8xbf16>
    %66 = vector.shape_cast %63 : vector<4x8x8xbf16> to vector<1x4x8x8xbf16>
    tpu.vector_store %arg8[%c0_16, %c0_17, %c0_18, %c0_19], %66 {strides = array<i32>} : memref<1x4x8x8xbf16, #tpu.memory_space<vmem>>, vector<1x4x8x8xbf16>,
    %67 = tpu.transpose %59, [1, 0, 2] : vector<8x4x8xf32> -> vector<4x8x8xf32>
    %68 = arith.truncf %67 : vector<4x8x8xf32> to vector<4x8x8xbf16>
    %c0_20 = arith.constant 0 : index
    %c0_21 = arith.constant 0 : index
    %c0_22 = arith.constant 0 : index
    %c0_23 = arith.constant 0 : index
    %69 = vector.load %arg9[%c0_20, %c0_21, %c0_22, %c0_23] : memref<1x4x8x8xbf16, #tpu.memory_space<vmem>>, vector<1x4x8x8xbf16>
    %70 = vector.shape_cast %69 : vector<1x4x8x8xbf16> to vector<4x8x8xbf16>
    %71 = vector.shape_cast %68 : vector<4x8x8xbf16> to vector<1x4x8x8xbf16>
    tpu.vector_store %arg9[%c0_20, %c0_21, %c0_22, %c0_23], %71 {strides = array<i32>} : memref<1x4x8x8xbf16, #tpu.memory_space<vmem>>, vector<1x4x8x8xbf16>,
    %72 = tpu.transpose %61, [1, 0, 2] : vector<8x4x8xf32> -> vector<4x8x8xf32>
    %73 = arith.truncf %72 : vector<4x8x8xf32> to vector<4x8x8xbf16>
    %c0_24 = arith.constant 0 : index
    %c0_25 = arith.constant 0 : index
    %c0_26 = arith.constant 0 : index
    %c0_27 = arith.constant 0 : index
    %74 = vector.load %arg10[%c0_24, %c0_25, %c0_26, %c0_27] : memref<1x4x8x8xbf16, #tpu.memory_space<vmem>>, vector<1x4x8x8xbf16>
    %75 = vector.shape_cast %74 : vector<1x4x8x8xbf16> to vector<4x8x8xbf16>
    %76 = vector.shape_cast %73 : vector<4x8x8xbf16> to vector<1x4x8x8xbf16>
    tpu.vector_store %arg10[%c0_24, %c0_25, %c0_26, %c0_27], %76 {strides = array<i32>} : memref<1x4x8x8xbf16, #tpu.memory_space<vmem>>, vector<1x4x8x8xbf16>,
    return
  }
  func.func @transform_0(%arg0: i32, %arg1: i32) -> (i32, i32, i32) {
    %c0_i32 = arith.constant 0 : i32
    %c0_i32_0 = arith.constant 0 : i32
    return %arg0, %arg1, %c0_i32 : i32, i32, i32
  }
  func.func @transform_1(%arg0: i32, %arg1: i32) -> (i32, i32) {
    %c0_i32 = arith.constant 0 : i32
    %c0_i32_0 = arith.constant 0 : i32
    %c0_i32_1 = arith.constant 0 : i32
    return %c0_i32, %c0_i32_0 : i32, i32
  }
  func.func @transform_2(%arg0: i32, %arg1: i32) -> (i32, i32) {
    %c0_i32 = arith.constant 0 : i32
    %c0_i32_0 = arith.constant 0 : i32
    %c0_i32_1 = arith.constant 0 : i32
    return %c0_i32, %c0_i32_0 : i32, i32
  }
  func.func @transform_3(%arg0: i32, %arg1: i32) -> (i32, i32) {
    %c0_i32 = arith.constant 0 : i32
    %c0_i32_0 = arith.constant 0 : i32
    return %arg1, %c0_i32 : i32, i32
  }
  func.func @transform_4(%arg0: i32, %arg1: i32) -> (i32, i32) {
    %c0_i32 = arith.constant 0 : i32
    %c0_i32_0 = arith.constant 0 : i32
    return %arg1, %c0_i32 : i32, i32
  }
  func.func @transform_5(%arg0: i32, %arg1: i32) -> (i32, i32) {
    %c0_i32 = arith.constant 0 : i32
    %c0_i32_0 = arith.constant 0 : i32
    return %arg1, %c0_i32 : i32, i32
  }
  func.func @transform_6(%arg0: i32, %arg1: i32) -> (i32, i32, i32, i32) {
    %c0_i32 = arith.constant 0 : i32
    %c0_i32_0 = arith.constant 0 : i32
    %c0_i32_1 = arith.constant 0 : i32
    return %arg0, %c0_i32, %arg1, %c0_i32_0 : i32, i32, i32, i32
  }
  func.func @transform_7(%arg0: i32, %arg1: i32) -> (i32, i32, i32, i32) {
    %c0_i32 = arith.constant 0 : i32
    %c0_i32_0 = arith.constant 0 : i32
    %c0_i32_1 = arith.constant 0 : i32
    return %arg0, %c0_i32, %arg1, %c0_i32_0 : i32, i32, i32, i32
  }
  func.func @transform_8(%arg0: i32, %arg1: i32) -> (i32, i32, i32, i32) {
    %c0_i32 = arith.constant 0 : i32
    %c0_i32_0 = arith.constant 0 : i32
    %c0_i32_1 = arith.constant 0 : i32
    return %arg0, %c0_i32, %arg1, %c0_i32_0 : i32, i32, i32, i32
  }
}

</mosaic_0001>

<llo_original>
// kernel: tpu_custom_call.1
$region0: #{tpu_custom_call.1}
  #allocation0 [shape = 'u32[]', space=smem, size = 0x4, offset = 0x4, fixed_abs, tag = 'smem constant byte address 0x4 - core index']
  #allocation1 [shape = 'u32[144,128]{1,0:T(1,128)}', space=vmem, size = 0x12000, scoped, tag = 'internal scratch']
  %s0 = inlined_call_operand.hbm [shape: f32[2,8,32], index: 0, kind: input, shape index: {}]
  %s1 = inlined_call_operand.hbm [shape: bf16[32,96], index: 1, kind: input, shape index: {}]
  %s2 = inlined_call_operand.hbm [shape: f32[1,32], index: 2, kind: input, shape index: {}]
  %s3 = inlined_call_operand.hbm [shape: f32[8,8], index: 3, kind: input, shape index: {}]
  %s4 = inlined_call_operand.hbm [shape: f32[8,8], index: 4, kind: input, shape index: {}]
  %s5 = inlined_call_operand.hbm [shape: f32[8,8], index: 5, kind: input, shape index: {}]
  %s6 = inlined_call_operand.hbm [shape: bf16[2,4,8,8], index: 6, kind: output, shape index: {0}]
  %s7 = inlined_call_operand.hbm [shape: bf16[2,4,8,8], index: 7, kind: output, shape index: {1}]
  %s8 = inlined_call_operand.hbm [shape: bf16[2,4,8,8], index: 8, kind: output, shape index: {2}]
  %9 = xla_tuple %s6, %s7, %s8
  %s10 = sld [smem:[#allocation0]]
  $region97: #{tpu_custom_call.1} parent=0
    _
  %s12 = ssub.s32 1, %s10
  %s13 = scalar_select 0, %s12, %s10
  $region1: #{tpu_custom_call.1} parent=0
    #allocation2 [shape = 'u8[8192]{0}', space=vmem, size = 0x2000, scoped, tag = 'input window, operand 0']
    #allocation3 [shape = 's32[2]{0}', space=sflag, size = 0x8, scoped, tag = 'scoped memory for tpu_custom_call.1']
    #allocation4 [shape = 's32[2]{0}', space=sflag, size = 0x8, scoped, tag = 'scoped memory for tpu_custom_call.1']
    #allocation5 [shape = 'u8[8192]{0}', space=vmem, size = 0x2000, scoped, tag = 'input window, operand 1, single buffered']
    #allocation6 [shape = 's32[1]{0}', space=sflag, size = 0x4, scoped, tag = 'scoped memory for tpu_custom_call.1']
    #allocation7 [shape = 'u8[512]{0}', space=vmem, size = 0x400, scoped, tag = 'input window, operand 2, single buffered']
    #allocation8 [shape = 'u8[4096]{0}', space=vmem, size = 0x1000, scoped, tag = 'input window, operand 3, single buffered']
    #allocation9 [shape = 's32[1]{0}', space=sflag, size = 0x4, scoped, tag = 'scoped memory for tpu_custom_call.1']
    #allocation10 [shape = 'u8[4096]{0}', space=vmem, size = 0x1000, scoped, tag = 'input window, operand 4, single buffered']
    #allocation11 [shape = 'u8[4096]{0}', space=vmem, size = 0x1000, scoped, tag = 'input window, operand 5, single buffered']
    #allocation12 [shape = 's32[1]{0}', space=sflag, size = 0x4, scoped, tag = 'scoped memory for tpu_custom_call.1']
    #allocation13 [shape = 'u8[16384]{0}', space=vmem, size = 0x4000, scoped, tag = 'output window, operand 0']
    #allocation14 [shape = 'u8[16384]{0}', space=vmem, size = 0x4000, scoped, tag = 'output window, operand 1']
    #allocation15 [shape = 's32[2]{0}', space=sflag, size = 0x8, scoped, tag = 'scoped memory for tpu_custom_call.1']
    #allocation16 [shape = 'u8[16384]{0}', space=vmem, size = 0x4000, scoped, tag = 'output window, operand 2']
    %14 = vsyncpa [#allocation3], 0
    %s15 = scalar_lea.sflag [#allocation3], 1
    %16 = vsyncpa %s15, 0
    %17 = vsyncpa [#allocation6], 0
    %18 = vsyncpa [#allocation9], 0
    %19 = vsyncpa [#allocation12], 0
    %20 = vsyncpa [#allocation4], 0
    %s21 = scalar_lea.sflag [#allocation4], 1
    %22 = vsyncpa %s21, 0
    %23 = vsyncpa [#allocation15], 0
    %s24 = scalar_lea.sflag [#allocation15], 1
    %25 = vsyncpa %s24, 0
    loop: start=0, step=1, limit=4
    $region2: #{tpu_custom_call.1} parent=1 // loop_pre_header
      _
    $region3: #{tpu_custom_call.1} parent=1 // loop_header
      %s27 = sphi 0, %s31
      %p28 = scmp.ge.s32.totalorder %s27, 4
      %s34 = sphi 0, %s46
      %s35 = sphi 0, %s42
      %s36 = sphi 0, %s34
      %s37 = sphi 0, %s35
      %s38 = sphi 0, %s36
      %s39 = sphi 0, %s37
      %s51 = sphi 0, %s53
      %s54 = sphi 0, %s51
      %s55 = sphi 0, %s54
      %s71 = sphi 0, %s55
      %s75 = sphi 0, %s75
      %s77 = sphi 0, %s75
      %s78 = sphi 0, %s77
      %s92 = sphi 0, %s78
      %s96 = sphi 0, %s96
      %s98 = sphi 0, %s96
      %s99 = sphi 0, %s98
      %s113 = sphi 0, %s99
      %s119 = sphi 0, %s121
      %s122 = sphi 0, %s119
      %s123 = sphi 0, %s122
      %s139 = sphi 0, %s123
      %s145 = sphi 0, %s147
      %s148 = sphi 0, %s145
      %s149 = sphi 0, %s148
      %s165 = sphi 0, %s149
      %s171 = sphi 0, %s173
      %s174 = sphi 0, %s171
      %s175 = sphi 0, %s174
      %s191 = sphi 0, %s175
      %s199 = sphi 0, %s201
      %s202 = sphi 0, %s199
      %s203 = sphi 0, %s202
      %s219 = sphi 0, %s203
      %s227 = sphi 0, %s229
      %s230 = sphi 0, %s227
      %s231 = sphi 0, %s230
      %s247 = sphi 0, %s231
      %s255 = sphi 0, %s257
      %s258 = sphi 0, %s255
      %s259 = sphi 0, %s258
      %s275 = sphi 0, %s259
    $region4: #{tpu_custom_call.1} parent=1 // loop_header_branch
      %30 = sbr.rel (%p28) target = $region8
    $region5: #{tpu_custom_call.1} parent=1 // loop_body
      %s32 = ssub.s32 %s27, 1
      %s33 = ssub.s32 %s27, 2
      %s40 = sadd.s32 1, %s35
      %p41 = scmp.ge.s32.totalorder %s40, 1
      %s42 = scalar_select %p41, 0, %s40
      %s43 = sadd.s32 1, %s34
      %s44 = scalar_select %p41, %s43, %s34
      %p45 = scmp.ge.s32.totalorder %s44, 2
      %s46 = scalar_select %p45, 0, %s44
      %s47 = ssub.s32 %s34, %s46
      %s48 = ssub.s32 %s35, %s42
      %s49 = sor.u32 %s47, %s48
      %p50 = scmp.eq.s32.totalorder %s49, 0
      %s52 = sadd.s32 %s51, 1
      %s53 = scalar_select %p50, %s51, %s52
      %p56 = pneg %p50
      %p57 = scmp.eq.s32.totalorder %s27, 1
      %p58 = por %p56, %p57
      %p59 = scmp.ne.s32.totalorder %s51, %s54
      %p60 = scmp.eq.s32.totalorder %s27, 0
      %p61 = por %p59, %p60
      %p62 = scmp.ne.s32.totalorder %s51, %s54
      %p63 = scmp.eq.s32.totalorder %s32, 1
      %p64 = por %p62, %p63
      %p65 = scmp.ne.s32.totalorder %s54, %s55
      %p66 = scmp.eq.s32.totalorder %s32, 0
      %p67 = por %p65, %p66
      %p68 = scmp.ne.s32.totalorder %s54, %s55
      %p69 = scmp.eq.s32.totalorder %s33, 1
      %p70 = por %p68, %p69
      %p72 = scmp.ne.s32.totalorder %s55, %s71
      %p73 = scmp.eq.s32.totalorder %s33, 0
      %p74 = por %p72, %p73
      %s76 = sadd.s32 %s75, 1
      %p79 = scmp.eq.s32.totalorder %s27, 1
      %p80 = scmp.ne.s32.totalorder %s75, %s77
      %p81 = scmp.eq.s32.totalorder %s27, 0
      %p82 = por %p80, %p81
      %p83 = scmp.ne.s32.totalorder %s75, %s77
      %p84 = scmp.eq.s32.totalorder %s32, 1
      %p85 = por %p83, %p84
      %p86 = scmp.ne.s32.totalorder %s77, %s78
      %p87 = scmp.eq.s32.totalorder %s32, 0
      %p88 = por %p86, %p87
      %p89 = scmp.ne.s32.totalorder %s77, %s78
      %p90 = scmp.eq.s32.totalorder %s33, 1
      %p91 = por %p89, %p90
      %p93 = scmp.ne.s32.totalorder %s78, %s92
      %p94 = scmp.eq.s32.totalorder %s33, 0
      %p95 = por %p93, %p94
      %s97 = sadd.s32 %s96, 1
      %p100 = scmp.eq.s32.totalorder %s27, 1
      %p101 = scmp.ne.s32.totalorder %s96, %s98
      %p102 = scmp.eq.s32.totalorder %s27, 0
      %p103 = por %p101, %p102
      %p104 = scmp.ne.s32.totalorder %s96, %s98
      %p105 = scmp.eq.s32.totalorder %s32, 1
      %p106 = por %p104, %p105
      %p107 = scmp.ne.s32.totalorder %s98, %s99
      %p108 = scmp.eq.s32.totalorder %s32, 0
      %p109 = por %p107, %p108
      %p110 = scmp.ne.s32.totalorder %s98, %s99
      %p111 = scmp.eq.s32.totalorder %s33, 1
      %p112 = por %p110, %p111
      %p114 = scmp.ne.s32.totalorder %s99, %s113
      %p115 = scmp.eq.s32.totalorder %s33, 0
      %p116 = por %p114, %p115
      %s117 = ssub.s32 %s35, %s42
      %p118 = scmp.eq.s32.totalorder %s117, 0
      %s120 = sadd.s32 %s119, 1
      %s121 = scalar_select %p118, %s119, %s120
      %p124 = pneg %p118
      %p125 = scmp.eq.s32.totalorder %s27, 1
      %p126 = por %p124, %p125
      %p127 = scmp.ne.s32.totalorder %s119, %s122
      %p128 = scmp.eq.s32.totalorder %s27, 0
      %p129 = por %p127, %p128
      %p130 = scmp.ne.s32.totalorder %s119, %s122
      %p131 = scmp.eq.s32.totalorder %s32, 1
      %p132 = por %p130, %p131
      %p133 = scmp.ne.s32.totalorder %s122, %s123
      %p134 = scmp.eq.s32.totalorder %s32, 0
      %p135 = por %p133, %p134
      %p136 = scmp.ne.s32.totalorder %s122, %s123
      %p137 = scmp.eq.s32.totalorder %s33, 1
      %p138 = por %p136, %p137
      %p140 = scmp.ne.s32.totalorder %s123, %s139
      %p141 = scmp.eq.s32.totalorder %s33, 0
      %p142 = por %p140, %p141
      %s143 = ssub.s32 %s35, %s42
      %p144 = scmp.eq.s32.totalorder %s143, 0
      %s146 = sadd.s32 %s145, 1
      %s147 = scalar_select %p144, %s145, %s146
      %p150 = pneg %p144
      %p151 = scmp.eq.s32.totalorder %s27, 1
      %p152 = por %p150, %p151
      %p153 = scmp.ne.s32.totalorder %s145, %s148
      %p154 = scmp.eq.s32.totalorder %s27, 0
      %p155 = por %p153, %p154
      %p156 = scmp.ne.s32.totalorder %s145, %s148
      %p157 = scmp.eq.s32.totalorder %s32, 1
      %p158 = por %p156, %p157
      %p159 = scmp.ne.s32.totalorder %s148, %s149
      %p160 = scmp.eq.s32.totalorder %s32, 0
      %p161 = por %p159, %p160
      %p162 = scmp.ne.s32.totalorder %s148, %s149
      %p163 = scmp.eq.s32.totalorder %s33, 1
      %p164 = por %p162, %p163
      %p166 = scmp.ne.s32.totalorder %s149, %s165
      %p167 = scmp.eq.s32.totalorder %s33, 0
      %p168 = por %p166, %p167
      %s169 = ssub.s32 %s35, %s42
      %p170 = scmp.eq.s32.totalorder %s169, 0
      %s172 = sadd.s32 %s171, 1
      %s173 = scalar_select %p170, %s171, %s172
      %p176 = pneg %p170
      %p177 = scmp.eq.s32.totalorder %s27, 1
      %p178 = por %p176, %p177
      %p179 = scmp.ne.s32.totalorder %s171, %s174
      %p180 = scmp.eq.s32.totalorder %s27, 0
      %p181 = por %p179, %p180
      %p182 = scmp.ne.s32.totalorder %s171, %s174
      %p183 = scmp.eq.s32.totalorder %s32, 1
      %p184 = por %p182, %p183
      %p185 = scmp.ne.s32.totalorder %s174, %s175
      %p186 = scmp.eq.s32.totalorder %s32, 0
      %p187 = por %p185, %p186
      %p188 = scmp.ne.s32.totalorder %s174, %s175
      %p189 = scmp.eq.s32.totalorder %s33, 1
      %p190 = por %p188, %p189
      %p192 = scmp.ne.s32.totalorder %s175, %s191
      %p193 = scmp.eq.s32.totalorder %s33, 0
      %p194 = por %p192, %p193
      %s195 = ssub.s32 %s34, %s46
      %s196 = ssub.s32 %s35, %s42
      %s197 = sor.u32 %s195, %s196
      %p198 = scmp.eq.s32.totalorder %s197, 0
      %s200 = sadd.s32 %s199, 1
      %s201 = scalar_select %p198, %s199, %s200
      %p204 = pneg %p198
      %p205 = scmp.eq.s32.totalorder %s27, 1
      %p206 = por %p204, %p205
      %p207 = scmp.ne.s32.totalorder %s199, %s202
      %p208 = scmp.eq.s32.totalorder %s27, 0
      %p209 = por %p207, %p208
      %p210 = scmp.ne.s32.totalorder %s199, %s202
      %p211 = scmp.eq.s32.totalorder %s32, 1
      %p212 = por %p210, %p211
      %p213 = scmp.ne.s32.totalorder %s202, %s203
      %p214 = scmp.eq.s32.totalorder %s32, 0
      %p215 = por %p213, %p214
      %p216 = scmp.ne.s32.totalorder %s202, %s203
      %p217 = scmp.eq.s32.totalorder %s33, 1
      %p218 = por %p216, %p217
      %p220 = scmp.ne.s32.totalorder %s203, %s219
      %p221 = scmp.eq.s32.totalorder %s33, 0
      %p222 = por %p220, %p221
      %s223 = ssub.s32 %s34, %s46
      %s224 = ssub.s32 %s35, %s42
      %s225 = sor.u32 %s223, %s224
      %p226 = scmp.eq.s32.totalorder %s225, 0
      %s228 = sadd.s32 %s227, 1
      %s229 = scalar_select %p226, %s227, %s228
      %p232 = pneg %p226
      %p233 = scmp.eq.s32.totalorder %s27, 1
      %p234 = por %p232, %p233
      %p235 = scmp.ne.s32.totalorder %s227, %s230
      %p236 = scmp.eq.s32.totalorder %s27, 0
      %p237 = por %p235, %p236
      %p238 = scmp.ne.s32.totalorder %s227, %s230
      %p239 = scmp.eq.s32.totalorder %s32, 1
      %p240 = por %p238, %p239
      %p241 = scmp.ne.s32.totalorder %s230, %s231
      %p242 = scmp.eq.s32.totalorder %s32, 0
      %p243 = por %p241, %p242
      %p244 = scmp.ne.s32.totalorder %s230, %s231
      %p245 = scmp.eq.s32.totalorder %s33, 1
      %p246 = por %p244, %p245
      %p248 = scmp.ne.s32.totalorder %s231, %s247
      %p249 = scmp.eq.s32.totalorder %s33, 0
      %p250 = por %p248, %p249
      %s251 = ssub.s32 %s34, %s46
      %s252 = ssub.s32 %s35, %s42
      %s253 = sor.u32 %s251, %s252
      %p254 = scmp.eq.s32.totalorder %s253, 0
      %s256 = sadd.s32 %s255, 1
      %s257 = scalar_select %p254, %s255, %s256
      %p260 = pneg %p254
      %p261 = scmp.eq.s32.totalorder %s27, 1
      %p262 = por %p260, %p261
      %p263 = scmp.ne.s32.totalorder %s255, %s258
      %p264 = scmp.eq.s32.totalorder %s27, 0
      %p265 = por %p263, %p264
      %p266 = scmp.ne.s32.totalorder %s255, %s258
      %p267 = scmp.eq.s32.totalorder %s32, 1
      %p268 = por %p266, %p267
      %p269 = scmp.ne.s32.totalorder %s258, %s259
      %p270 = scmp.eq.s32.totalorder %s32, 0
      %p271 = por %p269, %p270
      %p272 = scmp.ne.s32.totalorder %s258, %s259
      %p273 = scmp.eq.s32.totalorder %s33, 1
      %p274 = por %p272, %p273
      %p276 = scmp.ne.s32.totalorder %s259, %s275
      %p277 = scmp.eq.s32.totalorder %s33, 0
      %p278 = por %p276, %p277
      %p279 = scmp.le.s32.totalorder 1, %s27
      %p280 = scmp.lt.s32.totalorder %s27, 3
      %p281 = pnand %p279, %p280
      %p282 = pneg %p281
      // Predicated region
      $region9: #{tpu_custom_call.1} parent=5 // pred_check
        _
      $region10: #{tpu_custom_call.1} parent=5 // pred_check_branch
        %284 = sbr.rel (%p281) target = $region12
      $region11: #{tpu_custom_call.1} parent=5 // pred_region
        %s285 = ssub.s32 %s27, 1
        // Predicated region
        $region13: #{tpu_custom_call.1} parent=11 // pred_check
          %p286 = pneg %p88
        $region14: #{tpu_custom_call.1} parent=11 // pred_check_branch
          %288 = sbr.rel (%p286) target = $region16
        $region15: #{tpu_custom_call.1} parent=11 // pred_region
          %s290 = ssub.s32 256, 256
          %291 = vsyncadd [#allocation6], %s290
          %s292 = sshll.u32 [#allocation5], 4
          %s293 = int_to_ptr.vmem [resolvable:$true] %s292
          %298 = dma.hbm_to_vmem [thread:$0]  %s1, 256, %s293, [#allocation6], 64, 64, 4
        $region16: #{tpu_custom_call.1} parent=11 // pred_fallthru
          _
        // Predicated region
        $region17: #{tpu_custom_call.1} parent=11 // pred_check
          %p299 = pneg %p109
        $region18: #{tpu_custom_call.1} parent=11 // pred_check_branch
          %301 = sbr.rel (%p299) target = $region20
        $region19: #{tpu_custom_call.1} parent=11 // pred_region
          %s303 = ssub.s32 16, 16
          %304 = vsyncadd [#allocation6], %s303
          %s306 = sshll.u32 [#allocation7], 4
          %s307 = int_to_ptr.vmem [resolvable:$true] %s306
          %309 = dma.hbm_to_vmem [thread:$0]  %s2, 16, %s307, [#allocation6]
        $region20: #{tpu_custom_call.1} parent=11 // pred_fallthru
          _
        // Predicated region
        $region21: #{tpu_custom_call.1} parent=11 // pred_check
          %p310 = pneg %p135
        $region22: #{tpu_custom_call.1} parent=11 // pred_check_branch
          %312 = sbr.rel (%p310) target = $region24
        $region23: #{tpu_custom_call.1} parent=11 // pred_region
          %s314 = ssub.s32 128, 128
          %315 = vsyncadd [#allocation9], %s314
          %s316 = smul.addr %s37, 128
          %s317 = scalar_lea.hbm %s3, %s316
          %s319 = sshll.u32 [#allocation8], 4
          %s320 = int_to_ptr.vmem [resolvable:$true] %s319
          %322 = dma.hbm_to_vmem [thread:$0]  %s317, 128, %s320, [#allocation9]
        $region24: #{tpu_custom_call.1} parent=11 // pred_fallthru
          _
        // Predicated region
        $region25: #{tpu_custom_call.1} parent=11 // pred_check
          %p323 = pneg %p161
        $region26: #{tpu_custom_call.1} parent=11 // pred_check_branch
          %325 = sbr.rel (%p323) target = $region28
        $region27: #{tpu_custom_call.1} parent=11 // pred_region
          %s327 = ssub.s32 128, 128
          %328 = vsyncadd [#allocation9], %s327
          %s329 = smul.addr %s37, 128
          %s330 = scalar_lea.hbm %s4, %s329
          %s332 = sshll.u32 [#allocation10], 4
          %s333 = int_to_ptr.vmem [resolvable:$true] %s332
          %335 = dma.hbm_to_vmem [thread:$0]  %s330, 128, %s333, [#allocation9]
        $region28: #{tpu_custom_call.1} parent=11 // pred_fallthru
          _
        // Predicated region
        $region29: #{tpu_custom_call.1} parent=11 // pred_check
          %p336 = pneg %p187
        $region30: #{tpu_custom_call.1} parent=11 // pred_check_branch
          %338 = sbr.rel (%p336) target = $region32
        $region31: #{tpu_custom_call.1} parent=11 // pred_region
          %s340 = ssub.s32 128, 128
          %341 = vsyncadd [#allocation12], %s340
          %s342 = smul.addr %s37, 128
          %s343 = scalar_lea.hbm %s5, %s342
          %s345 = sshll.u32 [#allocation11], 4
          %s346 = int_to_ptr.vmem [resolvable:$true] %s345
          %348 = dma.hbm_to_vmem [thread:$0]  %s343, 128, %s346, [#allocation12]
        $region32: #{tpu_custom_call.1} parent=11 // pred_fallthru
          _
      $region12: #{tpu_custom_call.1} parent=5 // pred_fallthru
        _
      %p349 = scmp.lt.s32.totalorder %s27, 2
      // Predicated region
      $region33: #{tpu_custom_call.1} parent=5 // pred_check
        %p350 = pneg %p349
      $region34: #{tpu_custom_call.1} parent=5 // pred_check_branch
        %352 = sbr.rel (%p350) target = $region36
      $region35: #{tpu_custom_call.1} parent=5 // pred_region
        // Predicated region
        $region37: #{tpu_custom_call.1} parent=35 // pred_check
          %p353 = pneg %p61
        $region38: #{tpu_custom_call.1} parent=35 // pred_check_branch
          %355 = sbr.rel (%p353) target = $region40
        $region39: #{tpu_custom_call.1} parent=35 // pred_region
          %s356 = sand.u32 %s51, 1
          %s357 = scalar_lea.sflag [#allocation3], %s356
          %s358 = sand.u32 %s51, 1
          %s359 = smul.addr %s358, 8
          %s360 = scalar_lea.vmem [#allocation2], %s359
          %s362 = ssub.s32 128, 128
          %363 = vsyncadd %s357, %s362
          %s364 = sadd.s32 %s35, %s34
          %s365 = smul.addr %s364, 128
          %s366 = scalar_lea.hbm %s0, %s365
          %s368 = sshll.u32 %s360, 4
          %s369 = int_to_ptr.vmem [resolvable:$true] %s368
          %371 = dma.hbm_to_vmem [thread:$0]  %s366, 128, %s369, %s357
        $region40: #{tpu_custom_call.1} parent=35 // pred_fallthru
          _
      $region36: #{tpu_custom_call.1} parent=5 // pred_fallthru
        _
      %p372 = scmp.le.s32.totalorder 1, %s27
      %p373 = scmp.lt.s32.totalorder %s27, 3
      %p374 = pnand %p372, %p373
      %p375 = pneg %p374
      // Predicated region
      $region41: #{tpu_custom_call.1} parent=5 // pred_check
        _
      $region42: #{tpu_custom_call.1} parent=5 // pred_check_branch
        %377 = sbr.rel (%p374) target = $region44
      $region43: #{tpu_custom_call.1} parent=5 // pred_region
        %s378 = ssub.s32 %s27, 1
        %s379 = sand.u32 %s54, 1
        %s380 = scalar_lea.sflag [#allocation3], %s379
        %s381 = sand.u32 %s54, 1
        %s382 = smul.addr %s381, 8
        %s383 = scalar_lea.vmem [#allocation2], %s382
        // Predicated region
        $region45: #{tpu_custom_call.1} parent=43 // pred_check
          %p384 = pneg %p67
        $region46: #{tpu_custom_call.1} parent=43 // pred_check_branch
          %386 = sbr.rel (%p384) target = $region48
        $region47: #{tpu_custom_call.1} parent=43 // pred_region
          %387 = dma.done %s380, 128
        $region48: #{tpu_custom_call.1} parent=43 // pred_fallthru
          _
        // Predicated region
        $region49: #{tpu_custom_call.1} parent=43 // pred_check
          %p388 = pneg %p88
        $region50: #{tpu_custom_call.1} parent=43 // pred_check_branch
          %390 = sbr.rel (%p388) target = $region52
        $region51: #{tpu_custom_call.1} parent=43 // pred_region
          %391 = dma.done [#allocation6], 256
        $region52: #{tpu_custom_call.1} parent=43 // pred_fallthru
          _
        // Predicated region
        $region53: #{tpu_custom_call.1} parent=43 // pred_check
          %p392 = pneg %p109
        $region54: #{tpu_custom_call.1} parent=43 // pred_check_branch
          %394 = sbr.rel (%p392) target = $region56
        $region55: #{tpu_custom_call.1} parent=43 // pred_region
          %395 = dma.done [#allocation6], 16
        $region56: #{tpu_custom_call.1} parent=43 // pred_fallthru
          _
        // Predicated region
        $region57: #{tpu_custom_call.1} parent=43 // pred_check
          %p396 = pneg %p135
        $region58: #{tpu_custom_call.1} parent=43 // pred_check_branch
          %398 = sbr.rel (%p396) target = $region60
        $region59: #{tpu_custom_call.1} parent=43 // pred_region
          %399 = dma.done [#allocation9], 128
        $region60: #{tpu_custom_call.1} parent=43 // pred_fallthru
          _
        // Predicated region
        $region61: #{tpu_custom_call.1} parent=43 // pred_check
          %p400 = pneg %p161
        $region62: #{tpu_custom_call.1} parent=43 // pred_check_branch
          %402 = sbr.rel (%p400) target = $region64
        $region63: #{tpu_custom_call.1} parent=43 // pred_region
          %403 = dma.done [#allocation9], 128
        $region64: #{tpu_custom_call.1} parent=43 // pred_fallthru
          _
        // Predicated region
        $region65: #{tpu_custom_call.1} parent=43 // pred_check
          %p404 = pneg %p187
        $region66: #{tpu_custom_call.1} parent=43 // pred_check_branch
          %406 = sbr.rel (%p404) target = $region68
        $region67: #{tpu_custom_call.1} parent=43 // pred_region
          %407 = dma.done [#allocation12], 128
        $region68: #{tpu_custom_call.1} parent=43 // pred_fallthru
          _
        %s408 = sand.u32 %s54, 1
        %s409 = scalar_lea.sflag [#allocation3], %s408
        %s410 = sand.u32 %s54, 1
        %s411 = smul.addr %s410, 8
        %s412 = scalar_lea.vmem [#allocation2], %s411
        %p413 = pneg %p67
        %p414 = pneg %p64
        %p415 = pneg %p88
        %p416 = pneg %p85
        %p417 = pneg %p109
        %p418 = pneg %p106
        %p419 = pneg %p135
        %p420 = pneg %p132
        %p421 = pneg %p161
        %p422 = pneg %p158
        %p423 = pneg %p187
        %p424 = pneg %p184
        %p425 = pneg %p215
        %p426 = pneg %p212
        %s427 = sand.u32 %s202, 1
        %s428 = scalar_lea.sflag [#allocation4], %s427
        %s429 = sand.u32 %s202, 1
        %s430 = smul.addr %s429, 16
        %s431 = scalar_lea.vmem [#allocation13], %s430
        %p432 = pneg %p243
        %p433 = pneg %p240
        %s434 = sand.u32 %s32, 1
        %s435 = scalar_lea.sflag [#allocation15], %s434
        %s436 = sand.u32 %s230, 1
        %s437 = smul.addr %s436, 16
        %s438 = scalar_lea.vmem [#allocation14], %s437
        %p439 = pneg %p271
        %p440 = pneg %p268
        %s441 = sand.u32 %s32, 1
        %s442 = scalar_lea.sflag [#allocation15], %s441
        %s443 = sand.u32 %s258, 1
        %s444 = smul.addr %s443, 16
        %s445 = scalar_lea.vmem [#allocation16], %s444
        %v447 = vld [vmem:[%s383] sm:$0xff]
        %v448 = vld [vmem:[#allocation7] sm:$0x1]
        %v449 = vmul.f32 %v447, %v447
        %vm450 = vcmask 261120
        %v451 = vsel %vm450, %v449, 0.0
        %452 = vadd.xlane.f32.xlu0 %v451
        %v453 = vpop.xlane.xlu0 %452
        %v454 = vrcp.pop 32.0
        %v455 = vmul.f32 %v453, %v454
        %v456 = vadd.f32 %v455, 1e-05
        %v457 = vrsqrt.pop %v456
        %v458 = vmul.f32 %v447, %v457
        %v460 = vlaneseq
        %v461 = vshrl.u32 %v460, 7
        %v462 = vsub.s32 0, %v461
        %v463 = vrot.slane %v448, %v462
        %v465 = vmul.f32 %v458, %v463
        %v466 = vpack.c.bf16 %v465, %v465
        %v467 = vld [vmem:[#allocation5] sm:$0xf]
        %v468 = vld [vmem:[#allocation5 + $0x4] sm:$0xf]
        %v469 = vld [vmem:[#allocation5 + $0x8] sm:$0xf]
        %v470 = vld [vmem:[#allocation5 + $0xc] sm:$0xf]
        %v475 = vunpack.c.l.b16 %v467
        %v476 = vunpack.c.l.b16 %v468
        %v477 = vunpack.c.l.b16 %v469
        %v478 = vunpack.c.l.b16 %v470
        %v479 = vpack.c.b16 %v476, %v475
        %v480 = vpack.c.b16 %v478, %v477
        %v484 = vsel %vm450, %v466, 0
        %486 = vmatprep.subr.bf16.mxu0 0
        %487 = vmatpush1.bf16.msra.mxu0 %v479
        %488 = vmatprep.subr.bf16.mxu0 0
        %489 = vmatpush1.bf16.msra.mxu0 %v480
        %490 = vmatprep.subr.bf16.mxu0 0
        %491 = vmatpush1.bf16.msra.mxu0 0
        %492 = vmatprep.subr.bf16.mxu0 0
        %493 = vmatpush1.bf16.msra.mxu0 0
        %494 = vmatprep.subr.bf16.mxu0 0
        %495 = vmatpush1.bf16.msra.mxu0 0
        %496 = vmatprep.subr.bf16.mxu0 0
        %497 = vmatpush1.bf16.msra.mxu0 0
        %498 = vmatprep.subr.bf16.mxu0 0
        %499 = vmatpush1.bf16.msra.mxu0 0
        %500 = vmatprep.subr.bf16.mxu0 0
        %501 = vmatpush1.bf16.msra.mxu0 0
        %502 = vmatprep.subr.bf16.mxu0 0
        %503 = vmatpush1.bf16.msra.mxu0 0
        %504 = vmatprep.subr.bf16.mxu0 0
        %505 = vmatpush1.bf16.msra.mxu0 0
        %506 = vmatprep.subr.bf16.mxu0 0
        %507 = vmatpush1.bf16.msra.mxu0 0
        %508 = vmatprep.subr.bf16.mxu0 0
        %509 = vmatpush1.bf16.msra.mxu0 0
        %510 = vmatprep.subr.bf16.mxu0 0
        %511 = vmatpush1.bf16.msra.mxu0 0
        %512 = vmatprep.subr.bf16.mxu0 0
        %513 = vmatpush1.bf16.msra.mxu0 0
        %514 = vmatprep.subr.bf16.mxu0 0
        %515 = vmatpush1.bf16.msra.mxu0 0
        %516 = vmatprep.subr.bf16.mxu0 0
        %517 = vmatpush1.bf16.msra.mxu0 0
        %518 = vmatprep.mubr.bf16.mxu0 0
        %519 = vmatmul.mubr.bf16.gmra.mrb[0].mxu0 %v484
        %v520 = vpop.f32.mrb[0].mxu0
        %v521 = vadd.f32 0.0, %v520
        %v522 = vpop.f32.mrb[0].mxu0
        %v523 = vpop.f32.mrb[0].mxu0
        %v524 = vpop.f32.mrb[0].mxu0
        %525 = vdwg.mxu0
        %v526 = vld [vmem:[#allocation8] sm:$0xff]
        %v528 = vcombine.high %v526, %v526
        %v530 = vunpack.c.l.s4 1966171168
        %v531 = vunpack.c.0.s8 %v530
        %v532 = vlaneseq
        %v533 = vshrl.u32 %v532, 7
        %v534 = vsub.s32 %v531, %v533
        %v535 = vrot.slane %v526, %v534
        %v537 = vunpack.c.l.s4 1966171168
        %v538 = vunpack.c.0.s8 %v537
        %v539 = vlaneseq
        %v540 = vshrl.u32 %v539, 7
        %v541 = vsub.s32 %v538, %v540
        %v542 = vrot.slane %v528, %v541
        %v543 = vcombine.high %v535, %v535
        %v544 = vcombine.high %v542, %v542
        %v546 = vunpack.c.l.s4 1966171168
        %v547 = vunpack.c.0.s8 %v546
        %v548 = vlaneseq
        %v549 = vshrl.u32 %v548, 7
        %v550 = vsub.s32 %v547, %v549
        %v551 = vrot.slane %v535, %v550
        %v553 = vunpack.c.l.s4 1966171168
        %v554 = vunpack.c.0.s8 %v553
        %v555 = vlaneseq
        %v556 = vshrl.u32 %v555, 7
        %v557 = vsub.s32 %v554, %v556
        %v558 = vrot.slane %v542, %v557
        %v560 = vunpack.c.l.s4 1966171168
        %v561 = vunpack.c.0.s8 %v560
        %v562 = vlaneseq
        %v563 = vshrl.u32 %v562, 7
        %v564 = vsub.s32 %v561, %v563
        %v565 = vrot.slane %v543, %v564
        %v567 = vunpack.c.l.s4 1966171168
        %v568 = vunpack.c.0.s8 %v567
        %v569 = vlaneseq
        %v570 = vshrl.u32 %v569, 7
        %v571 = vsub.s32 %v568, %v570
        %v572 = vrot.slane %v544, %v571
        %v573 = vcombine.high %v551, %v551
        %v574 = vcombine.high %v558, %v558
        %v575 = vcombine.high %v565, %v565
        %v576 = vcombine.high %v572, %v572
        %v577 = vld [vmem:[#allocation10] sm:$0xff]
        %v579 = vcombine.high %v577, %v577
        %v581 = vunpack.c.l.s4 1966171168
        %v582 = vunpack.c.0.s8 %v581
        %v583 = vlaneseq
        %v584 = vshrl.u32 %v583, 7
        %v585 = vsub.s32 %v582, %v584
        %v586 = vrot.slane %v577, %v585
        %v588 = vunpack.c.l.s4 1966171168
        %v589 = vunpack.c.0.s8 %v588
        %v590 = vlaneseq
        %v591 = vshrl.u32 %v590, 7
        %v592 = vsub.s32 %v589, %v591
        %v593 = vrot.slane %v579, %v592
        %v594 = vcombine.high %v586, %v586
        %v595 = vcombine.high %v593, %v593
        %v597 = vunpack.c.l.s4 1966171168
        %v598 = vunpack.c.0.s8 %v597
        %v599 = vlaneseq
        %v600 = vshrl.u32 %v599, 7
        %v601 = vsub.s32 %v598, %v600
        %v602 = vrot.slane %v586, %v601
        %v604 = vunpack.c.l.s4 1966171168
        %v605 = vunpack.c.0.s8 %v604
        %v606 = vlaneseq
        %v607 = vshrl.u32 %v606, 7
        %v608 = vsub.s32 %v605, %v607
        %v609 = vrot.slane %v593, %v608
        %v611 = vunpack.c.l.s4 1966171168
        %v612 = vunpack.c.0.s8 %v611
        %v613 = vlaneseq
        %v614 = vshrl.u32 %v613, 7
        %v615 = vsub.s32 %v612, %v614
        %v616 = vrot.slane %v594, %v615
        %v618 = vunpack.c.l.s4 1966171168
        %v619 = vunpack.c.0.s8 %v618
        %v620 = vlaneseq
        %v621 = vshrl.u32 %v620, 7
        %v622 = vsub.s32 %v619, %v621
        %v623 = vrot.slane %v595, %v622
        %v624 = vcombine.high %v602, %v602
        %v625 = vcombine.high %v609, %v609
        %v626 = vcombine.high %v616, %v616
        %v627 = vcombine.high %v623, %v623
        %v628 = vld [vmem:[#allocation11] sm:$0xff]
        %v630 = vcombine.high %v628, %v628
        %v632 = vunpack.c.l.s4 1966171168
        %v633 = vunpack.c.0.s8 %v632
        %v634 = vlaneseq
        %v635 = vshrl.u32 %v634, 7
        %v636 = vsub.s32 %v633, %v635
        %v637 = vrot.slane %v628, %v636
        %v639 = vunpack.c.l.s4 1966171168
        %v640 = vunpack.c.0.s8 %v639
        %v641 = vlaneseq
        %v642 = vshrl.u32 %v641, 7
        %v643 = vsub.s32 %v640, %v642
        %v644 = vrot.slane %v630, %v643
        %v645 = vcombine.high %v637, %v637
        %v646 = vcombine.high %v644, %v644
        %v648 = vunpack.c.l.s4 1966171168
        %v649 = vunpack.c.0.s8 %v648
        %v650 = vlaneseq
        %v651 = vshrl.u32 %v650, 7
        %v652 = vsub.s32 %v649, %v651
        %v653 = vrot.slane %v637, %v652
        %v655 = vunpack.c.l.s4 1966171168
        %v656 = vunpack.c.0.s8 %v655
        %v657 = vlaneseq
        %v658 = vshrl.u32 %v657, 7
        %v659 = vsub.s32 %v656, %v658
        %v660 = vrot.slane %v644, %v659
        %v662 = vunpack.c.l.s4 1966171168
        %v663 = vunpack.c.0.s8 %v662
        %v664 = vlaneseq
        %v665 = vshrl.u32 %v664, 7
        %v666 = vsub.s32 %v663, %v665
        %v667 = vrot.slane %v645, %v666
        %v669 = vunpack.c.l.s4 1966171168
        %v670 = vunpack.c.0.s8 %v669
        %v671 = vlaneseq
        %v672 = vshrl.u32 %v671, 7
        %v673 = vsub.s32 %v670, %v672
        %v674 = vrot.slane %v646, %v673
        %v675 = vcombine.high %v653, %v653
        %v676 = vcombine.high %v660, %v660
        %v677 = vcombine.high %v667, %v667
        %v678 = vcombine.high %v674, %v674
        %680 = vrot.lane.b32.xlu0 %v521, 120
        %v681 = vpop.permute.xlu0 %680
        %683 = vrot.lane.b32.xlu0 %v521, 112
        %v684 = vpop.permute.xlu0 %683
        %686 = vrot.lane.b32.xlu0 %v521, 104
        %v687 = vpop.permute.xlu0 %686
        %v689 = vcombine.low %v521, %v684
        %v690 = vcombine.high %v521, %v684
        %v692 = vunpack.c.l.s4 1983009808
        %v693 = vunpack.c.0.s8 %v692
        %v694 = vlaneseq
        %v695 = vshrl.u32 %v694, 7
        %v696 = vsub.s32 %v693, %v695
        %v697 = vrot.slane %v689, %v696
        %v699 = vunpack.c.l.s4 1983009808
        %v700 = vunpack.c.0.s8 %v699
        %v701 = vlaneseq
        %v702 = vshrl.u32 %v701, 7
        %v703 = vsub.s32 %v700, %v702
        %v704 = vrot.slane %v690, %v703
        %v705 = vcombine.low %v681, %v687
        %v706 = vcombine.high %v681, %v687
        %v708 = vunpack.c.l.s4 1983009808
        %v709 = vunpack.c.0.s8 %v708
        %v710 = vlaneseq
        %v711 = vshrl.u32 %v710, 7
        %v712 = vsub.s32 %v709, %v711
        %v713 = vrot.slane %v705, %v712
        %v715 = vunpack.c.l.s4 1983009808
        %v716 = vunpack.c.0.s8 %v715
        %v717 = vlaneseq
        %v718 = vshrl.u32 %v717, 7
        %v719 = vsub.s32 %v716, %v718
        %v720 = vrot.slane %v706, %v719
        %v721 = vcombine.low %v697, %v713
        %v722 = vcombine.high %v697, %v713
        %v724 = vunpack.c.l.s4 1934713408
        %v725 = vunpack.c.0.s8 %v724
        %v726 = vlaneseq
        %v727 = vshrl.u32 %v726, 7
        %v728 = vsub.s32 %v725, %v727
        %v729 = vrot.slane %v721, %v728
        %v731 = vunpack.c.l.s4 1934713408
        %v732 = vunpack.c.0.s8 %v731
        %v733 = vlaneseq
        %v734 = vshrl.u32 %v733, 7
        %v735 = vsub.s32 %v732, %v734
        %v736 = vrot.slane %v722, %v735
        %v737 = vcombine.low %v704, %v720
        %v738 = vcombine.high %v704, %v720
        %v740 = vunpack.c.l.s4 1934713408
        %v741 = vunpack.c.0.s8 %v740
        %v742 = vlaneseq
        %v743 = vshrl.u32 %v742, 7
        %v744 = vsub.s32 %v741, %v743
        %v745 = vrot.slane %v737, %v744
        %v747 = vunpack.c.l.s4 1934713408
        %v748 = vunpack.c.0.s8 %v747
        %v749 = vlaneseq
        %v750 = vshrl.u32 %v749, 7
        %v751 = vsub.s32 %v748, %v750
        %v752 = vrot.slane %v738, %v751
        %v753 = vcombine.high %v729, 0.0
        %v754 = vcombine.high %v736, 0.0
        %v755 = vcombine.high %v745, 0.0
        %v756 = vcombine.high %v752, 0.0
        %765 = vrot.lane.b32.xlu0 %v729, 127
        %v766 = vpop.permute.xlu0 %765
        %767 = vrot.lane.b32.xlu0 %v753, 127
        %v768 = vpop.permute.xlu0 %767
        %769 = vrot.lane.b32.xlu0 %v736, 127
        %v770 = vpop.permute.xlu0 %769
        %771 = vrot.lane.b32.xlu0 %v754, 127
        %v772 = vpop.permute.xlu0 %771
        %773 = vrot.lane.b32.xlu0 %v745, 127
        %v774 = vpop.permute.xlu0 %773
        %775 = vrot.lane.b32.xlu0 %v755, 127
        %v776 = vpop.permute.xlu0 %775
        %777 = vrot.lane.b32.xlu0 %v752, 127
        %v778 = vpop.permute.xlu0 %777
        %779 = vrot.lane.b32.xlu0 %v756, 127
        %v780 = vpop.permute.xlu0 %779
        %789 = vrot.lane.b32.xlu0 %v729, 7
        %v790 = vpop.permute.xlu0 %789
        %791 = vrot.lane.b32.xlu0 %v753, 7
        %v792 = vpop.permute.xlu0 %791
        %793 = vrot.lane.b32.xlu0 %v736, 7
        %v794 = vpop.permute.xlu0 %793
        %795 = vrot.lane.b32.xlu0 %v754, 7
        %v796 = vpop.permute.xlu0 %795
        %797 = vrot.lane.b32.xlu0 %v745, 7
        %v798 = vpop.permute.xlu0 %797
        %799 = vrot.lane.b32.xlu0 %v755, 7
        %v800 = vpop.permute.xlu0 %799
        %801 = vrot.lane.b32.xlu0 %v752, 7
        %v802 = vpop.permute.xlu0 %801
        %803 = vrot.lane.b32.xlu0 %v756, 7
        %v804 = vpop.permute.xlu0 %803
        %vm813 = vcmask 56320
        %v814 = vsel %vm813, %v766, %v790
        %v815 = vsel %vm813, %v768, %v792
        %v816 = vsel %vm813, %v770, %v794
        %v817 = vsel %vm813, %v772, %v796
        %v818 = vsel %vm813, %v774, %v798
        %v819 = vsel %vm813, %v776, %v800
        %v820 = vsel %vm813, %v778, %v802
        %v821 = vsel %vm813, %v780, %v804
        %822 = vrot.lane.b32.xlu0 %v729, 121
        %v823 = vpop.permute.xlu0 %822
        %824 = vrot.lane.b32.xlu0 %v753, 121
        %v825 = vpop.permute.xlu0 %824
        %826 = vrot.lane.b32.xlu0 %v736, 121
        %v827 = vpop.permute.xlu0 %826
        %828 = vrot.lane.b32.xlu0 %v754, 121
        %v829 = vpop.permute.xlu0 %828
        %830 = vrot.lane.b32.xlu0 %v745, 121
        %v831 = vpop.permute.xlu0 %830
        %832 = vrot.lane.b32.xlu0 %v755, 121
        %v833 = vpop.permute.xlu0 %832
        %834 = vrot.lane.b32.xlu0 %v752, 121
        %v835 = vpop.permute.xlu0 %834
        %836 = vrot.lane.b32.xlu0 %v756, 121
        %v837 = vpop.permute.xlu0 %836
        %846 = vrot.lane.b32.xlu0 %v729, 1
        %v847 = vpop.permute.xlu0 %846
        %848 = vrot.lane.b32.xlu0 %v753, 1
        %v849 = vpop.permute.xlu0 %848
        %850 = vrot.lane.b32.xlu0 %v736, 1
        %v851 = vpop.permute.xlu0 %850
        %852 = vrot.lane.b32.xlu0 %v754, 1
        %v853 = vpop.permute.xlu0 %852
        %854 = vrot.lane.b32.xlu0 %v745, 1
        %v855 = vpop.permute.xlu0 %854
        %856 = vrot.lane.b32.xlu0 %v755, 1
        %v857 = vpop.permute.xlu0 %856
        %858 = vrot.lane.b32.xlu0 %v752, 1
        %v859 = vpop.permute.xlu0 %858
        %860 = vrot.lane.b32.xlu0 %v756, 1
        %v861 = vpop.permute.xlu0 %860
        %vm870 = vcmask 7168
        %v871 = vsel %vm870, %v823, %v847
        %v872 = vsel %vm870, %v825, %v849
        %v873 = vsel %vm870, %v827, %v851
        %v874 = vsel %vm870, %v829, %v853
        %v875 = vsel %vm870, %v831, %v855
        %v876 = vsel %vm870, %v833, %v857
        %v877 = vsel %vm870, %v835, %v859
        %v878 = vsel %vm870, %v837, %v861
        %v879 = vlaneseq
        %v880 = vshrl.u32 %v879, 7
        %v881 = vsub.s32 0, %v880
        %v882 = vrot.slane %v551, %v881
        %v883 = vlaneseq
        %v884 = vshrl.u32 %v883, 7
        %v885 = vsub.s32 0, %v884
        %v886 = vrot.slane %v565, %v885
        %v887 = vlaneseq
        %v888 = vshrl.u32 %v887, 7
        %v889 = vsub.s32 0, %v888
        %v890 = vrot.slane %v573, %v889
        %v891 = vlaneseq
        %v892 = vshrl.u32 %v891, 7
        %v893 = vsub.s32 0, %v892
        %v894 = vrot.slane %v575, %v893
        %v895 = vlaneseq
        %v896 = vshrl.u32 %v895, 7
        %v897 = vsub.s32 0, %v896
        %v898 = vrot.slane %v558, %v897
        %v899 = vlaneseq
        %v900 = vshrl.u32 %v899, 7
        %v901 = vsub.s32 0, %v900
        %v902 = vrot.slane %v572, %v901
        %v903 = vlaneseq
        %v904 = vshrl.u32 %v903, 7
        %v905 = vsub.s32 0, %v904
        %v906 = vrot.slane %v574, %v905
        %v907 = vlaneseq
        %v908 = vshrl.u32 %v907, 7
        %v909 = vsub.s32 0, %v908
        %v910 = vrot.slane %v576, %v909
        %v919 = vmul.f32 %v729, %v882
        %v920 = vmul.f32 %v753, %v886
        %v921 = vmul.f32 %v736, %v890
        %v922 = vmul.f32 %v754, %v894
        %v923 = vmul.f32 %v745, %v898
        %v924 = vmul.f32 %v755, %v902
        %v925 = vmul.f32 %v752, %v906
        %v926 = vmul.f32 %v756, %v910
        %v927 = vlaneseq
        %v928 = vshrl.u32 %v927, 7
        %v929 = vsub.s32 0, %v928
        %v930 = vrot.slane %v602, %v929
        %v931 = vlaneseq
        %v932 = vshrl.u32 %v931, 7
        %v933 = vsub.s32 0, %v932
        %v934 = vrot.slane %v616, %v933
        %v935 = vlaneseq
        %v936 = vshrl.u32 %v935, 7
        %v937 = vsub.s32 0, %v936
        %v938 = vrot.slane %v624, %v937
        %v939 = vlaneseq
        %v940 = vshrl.u32 %v939, 7
        %v941 = vsub.s32 0, %v940
        %v942 = vrot.slane %v626, %v941
        %v943 = vlaneseq
        %v944 = vshrl.u32 %v943, 7
        %v945 = vsub.s32 0, %v944
        %v946 = vrot.slane %v609, %v945
        %v947 = vlaneseq
        %v948 = vshrl.u32 %v947, 7
        %v949 = vsub.s32 0, %v948
        %v950 = vrot.slane %v623, %v949
        %v951 = vlaneseq
        %v952 = vshrl.u32 %v951, 7
        %v953 = vsub.s32 0, %v952
        %v954 = vrot.slane %v625, %v953
        %v955 = vlaneseq
        %v956 = vshrl.u32 %v955, 7
        %v957 = vsub.s32 0, %v956
        %v958 = vrot.slane %v627, %v957
        %v967 = vmul.f32 %v814, %v930
        %v968 = vmul.f32 %v815, %v934
        %v969 = vmul.f32 %v816, %v938
        %v970 = vmul.f32 %v817, %v942
        %v971 = vmul.f32 %v818, %v946
        %v972 = vmul.f32 %v819, %v950
        %v973 = vmul.f32 %v820, %v954
        %v974 = vmul.f32 %v821, %v958
        %v975 = vadd.f32 %v919, %v967
        %v976 = vadd.f32 %v920, %v968
        %v977 = vadd.f32 %v921, %v969
        %v978 = vadd.f32 %v922, %v970
        %v979 = vadd.f32 %v923, %v971
        %v980 = vadd.f32 %v924, %v972
        %v981 = vadd.f32 %v925, %v973
        %v982 = vadd.f32 %v926, %v974
        %v983 = vlaneseq
        %v984 = vshrl.u32 %v983, 7
        %v985 = vsub.s32 0, %v984
        %v986 = vrot.slane %v653, %v985
        %v987 = vlaneseq
        %v988 = vshrl.u32 %v987, 7
        %v989 = vsub.s32 0, %v988
        %v990 = vrot.slane %v667, %v989
        %v991 = vlaneseq
        %v992 = vshrl.u32 %v991, 7
        %v993 = vsub.s32 0, %v992
        %v994 = vrot.slane %v675, %v993
        %v995 = vlaneseq
        %v996 = vshrl.u32 %v995, 7
        %v997 = vsub.s32 0, %v996
        %v998 = vrot.slane %v677, %v997
        %v999 = vlaneseq
        %v1000 = vshrl.u32 %v999, 7
        %v1001 = vsub.s32 0, %v1000
        %v1002 = vrot.slane %v660, %v1001
        %v1003 = vlaneseq
        %v1004 = vshrl.u32 %v1003, 7
        %v1005 = vsub.s32 0, %v1004
        %v1006 = vrot.slane %v674, %v1005
        %v1007 = vlaneseq
        %v1008 = vshrl.u32 %v1007, 7
        %v1009 = vsub.s32 0, %v1008
        %v1010 = vrot.slane %v676, %v1009
        %v1011 = vlaneseq
        %v1012 = vshrl.u32 %v1011, 7
        %v1013 = vsub.s32 0, %v1012
        %v1014 = vrot.slane %v678, %v1013
        %v1023 = vmul.f32 %v871, %v986
        %v1024 = vmul.f32 %v872, %v990
        %v1025 = vmul.f32 %v873, %v994
        %v1026 = vmul.f32 %v874, %v998
        %v1027 = vmul.f32 %v875, %v1002
        %v1028 = vmul.f32 %v876, %v1006
        %v1029 = vmul.f32 %v877, %v1010
        %v1030 = vmul.f32 %v878, %v1014
        %v1031 = vadd.f32 %v975, %v1023
        %v1032 = vadd.f32 %v976, %v1024
        %v1033 = vadd.f32 %v977, %v1025
        %v1034 = vadd.f32 %v978, %v1026
        %v1035 = vadd.f32 %v979, %v1027
        %v1036 = vadd.f32 %v980, %v1028
        %v1037 = vadd.f32 %v981, %v1029
        %v1038 = vadd.f32 %v982, %v1030
        %v1039 = vmul.f32 %v1031, 0.35355338
        %v1040 = vmul.f32 %v1032, 0.35355338
        %v1041 = vmul.f32 %v1033, 0.35355338
        %v1042 = vmul.f32 %v1034, 0.35355338
        %v1043 = vmul.f32 %v1035, 0.35355338
        %v1044 = vmul.f32 %v1036, 0.35355338
        %v1045 = vmul.f32 %v1037, 0.35355338
        %v1046 = vmul.f32 %v1038, 0.35355338
        %1047 = vrot.lane.b32.xlu0 %v521, 96
        %v1048 = vpop.permute.xlu0 %1047
        %1049 = vrot.lane.b32.xlu0 %v681, 96
        %v1050 = vpop.permute.xlu0 %1049
        %1051 = vrot.lane.b32.xlu0 %v684, 96
        %v1052 = vpop.permute.xlu0 %1051
        %1053 = vrot.lane.b32.xlu0 %v687, 96
        %v1054 = vpop.permute.xlu0 %1053
        %v1059 = vcombine.low %v1048, %v1052
        %v1060 = vcombine.high %v1048, %v1052
        %v1062 = vunpack.c.l.s4 1983009808
        %v1063 = vunpack.c.0.s8 %v1062
        %v1064 = vlaneseq
        %v1065 = vshrl.u32 %v1064, 7
        %v1066 = vsub.s32 %v1063, %v1065
        %v1067 = vrot.slane %v1059, %v1066
        %v1069 = vunpack.c.l.s4 1983009808
        %v1070 = vunpack.c.0.s8 %v1069
        %v1071 = vlaneseq
        %v1072 = vshrl.u32 %v1071, 7
        %v1073 = vsub.s32 %v1070, %v1072
        %v1074 = vrot.slane %v1060, %v1073
        %v1075 = vcombine.low %v1050, %v1054
        %v1076 = vcombine.high %v1050, %v1054
        %v1078 = vunpack.c.l.s4 1983009808
        %v1079 = vunpack.c.0.s8 %v1078
        %v1080 = vlaneseq
        %v1081 = vshrl.u32 %v1080, 7
        %v1082 = vsub.s32 %v1079, %v1081
        %v1083 = vrot.slane %v1075, %v1082
        %v1085 = vunpack.c.l.s4 1983009808
        %v1086 = vunpack.c.0.s8 %v1085
        %v1087 = vlaneseq
        %v1088 = vshrl.u32 %v1087, 7
        %v1089 = vsub.s32 %v1086, %v1088
        %v1090 = vrot.slane %v1076, %v1089
        %v1091 = vcombine.low %v1067, %v1083
        %v1092 = vcombine.high %v1067, %v1083
        %v1094 = vunpack.c.l.s4 1934713408
        %v1095 = vunpack.c.0.s8 %v1094
        %v1096 = vlaneseq
        %v1097 = vshrl.u32 %v1096, 7
        %v1098 = vsub.s32 %v1095, %v1097
        %v1099 = vrot.slane %v1091, %v1098
        %v1101 = vunpack.c.l.s4 1934713408
        %v1102 = vunpack.c.0.s8 %v1101
        %v1103 = vlaneseq
        %v1104 = vshrl.u32 %v1103, 7
        %v1105 = vsub.s32 %v1102, %v1104
        %v1106 = vrot.slane %v1092, %v1105
        %v1107 = vcombine.low %v1074, %v1090
        %v1108 = vcombine.high %v1074, %v1090
        %v1110 = vunpack.c.l.s4 1934713408
        %v1111 = vunpack.c.0.s8 %v1110
        %v1112 = vlaneseq
        %v1113 = vshrl.u32 %v1112, 7
        %v1114 = vsub.s32 %v1111, %v1113
        %v1115 = vrot.slane %v1107, %v1114
        %v1117 = vunpack.c.l.s4 1934713408
        %v1118 = vunpack.c.0.s8 %v1117
        %v1119 = vlaneseq
        %v1120 = vshrl.u32 %v1119, 7
        %v1121 = vsub.s32 %v1118, %v1120
        %v1122 = vrot.slane %v1108, %v1121
        %v1123 = vcombine.high %v1099, 0.0
        %v1124 = vcombine.high %v1106, 0.0
        %v1125 = vcombine.high %v1115, 0.0
        %v1126 = vcombine.high %v1122, 0.0
        %1135 = vrot.lane.b32.xlu0 %v1099, 127
        %v1136 = vpop.permute.xlu0 %1135
        %1137 = vrot.lane.b32.xlu0 %v1123, 127
        %v1138 = vpop.permute.xlu0 %1137
        %1139 = vrot.lane.b32.xlu0 %v1106, 127
        %v1140 = vpop.permute.xlu0 %1139
        %1141 = vrot.lane.b32.xlu0 %v1124, 127
        %v1142 = vpop.permute.xlu0 %1141
        %1143 = vrot.lane.b32.xlu0 %v1115, 127
        %v1144 = vpop.permute.xlu0 %1143
        %1145 = vrot.lane.b32.xlu0 %v1125, 127
        %v1146 = vpop.permute.xlu0 %1145
        %1147 = vrot.lane.b32.xlu0 %v1122, 127
        %v1148 = vpop.permute.xlu0 %1147
        %1149 = vrot.lane.b32.xlu0 %v1126, 127
        %v1150 = vpop.permute.xlu0 %1149
        %1159 = vrot.lane.b32.xlu0 %v1099, 7
        %v1160 = vpop.permute.xlu0 %1159
        %1161 = vrot.lane.b32.xlu0 %v1123, 7
        %v1162 = vpop.permute.xlu0 %1161
        %1163 = vrot.lane.b32.xlu0 %v1106, 7
        %v1164 = vpop.permute.xlu0 %1163
        %1165 = vrot.lane.b32.xlu0 %v1124, 7
        %v1166 = vpop.permute.xlu0 %1165
        %1167 = vrot.lane.b32.xlu0 %v1115, 7
        %v1168 = vpop.permute.xlu0 %1167
        %1169 = vrot.lane.b32.xlu0 %v1125, 7
        %v1170 = vpop.permute.xlu0 %1169
        %1171 = vrot.lane.b32.xlu0 %v1122, 7
        %v1172 = vpop.permute.xlu0 %1171
        %1173 = vrot.lane.b32.xlu0 %v1126, 7
        %v1174 = vpop.permute.xlu0 %1173
        %v1183 = vsel %vm813, %v1136, %v1160
        %v1184 = vsel %vm813, %v1138, %v1162
        %v1185 = vsel %vm813, %v1140, %v1164
        %v1186 = vsel %vm813, %v1142, %v1166
        %v1187 = vsel %vm813, %v1144, %v1168
        %v1188 = vsel %vm813, %v1146, %v1170
        %v1189 = vsel %vm813, %v1148, %v1172
        %v1190 = vsel %vm813, %v1150, %v1174
        %1191 = vrot.lane.b32.xlu0 %v1099, 121
        %v1192 = vpop.permute.xlu0 %1191
        %1193 = vrot.lane.b32.xlu0 %v1123, 121
        %v1194 = vpop.permute.xlu0 %1193
        %1195 = vrot.lane.b32.xlu0 %v1106, 121
        %v1196 = vpop.permute.xlu0 %1195
        %1197 = vrot.lane.b32.xlu0 %v1124, 121
        %v1198 = vpop.permute.xlu0 %1197
        %1199 = vrot.lane.b32.xlu0 %v1115, 121
        %v1200 = vpop.permute.xlu0 %1199
        %1201 = vrot.lane.b32.xlu0 %v1125, 121
        %v1202 = vpop.permute.xlu0 %1201
        %1203 = vrot.lane.b32.xlu0 %v1122, 121
        %v1204 = vpop.permute.xlu0 %1203
        %1205 = vrot.lane.b32.xlu0 %v1126, 121
        %v1206 = vpop.permute.xlu0 %1205
        %1215 = vrot.lane.b32.xlu0 %v1099, 1
        %v1216 = vpop.permute.xlu0 %1215
        %1217 = vrot.lane.b32.xlu0 %v1123, 1
        %v1218 = vpop.permute.xlu0 %1217
        %1219 = vrot.lane.b32.xlu0 %v1106, 1
        %v1220 = vpop.permute.xlu0 %1219
        %1221 = vrot.lane.b32.xlu0 %v1124, 1
        %v1222 = vpop.permute.xlu0 %1221
        %1223 = vrot.lane.b32.xlu0 %v1115, 1
        %v1224 = vpop.permute.xlu0 %1223
        %1225 = vrot.lane.b32.xlu0 %v1125, 1
        %v1226 = vpop.permute.xlu0 %1225
        %1227 = vrot.lane.b32.xlu0 %v1122, 1
        %v1228 = vpop.permute.xlu0 %1227
        %1229 = vrot.lane.b32.xlu0 %v1126, 1
        %v1230 = vpop.permute.xlu0 %1229
        %v1239 = vsel %vm870, %v1192, %v1216
        %v1240 = vsel %vm870, %v1194, %v1218
        %v1241 = vsel %vm870, %v1196, %v1220
        %v1242 = vsel %vm870, %v1198, %v1222
        %v1243 = vsel %vm870, %v1200, %v1224
        %v1244 = vsel %vm870, %v1202, %v1226
        %v1245 = vsel %vm870, %v1204, %v1228
        %v1246 = vsel %vm870, %v1206, %v1230
        %v1247 = vmul.f32 %v1099, %v882
        %v1248 = vmul.f32 %v1123, %v886
        %v1249 = vmul.f32 %v1106, %v890
        %v1250 = vmul.f32 %v1124, %v894
        %v1251 = vmul.f32 %v1115, %v898
        %v1252 = vmul.f32 %v1125, %v902
        %v1253 = vmul.f32 %v1122, %v906
        %v1254 = vmul.f32 %v1126, %v910
        %v1255 = vmul.f32 %v1183, %v930
        %v1256 = vmul.f32 %v1184, %v934
        %v1257 = vmul.f32 %v1185, %v938
        %v1258 = vmul.f32 %v1186, %v942
        %v1259 = vmul.f32 %v1187, %v946
        %v1260 = vmul.f32 %v1188, %v950
        %v1261 = vmul.f32 %v1189, %v954
        %v1262 = vmul.f32 %v1190, %v958
        %v1263 = vadd.f32 %v1247, %v1255
        %v1264 = vadd.f32 %v1248, %v1256
        %v1265 = vadd.f32 %v1249, %v1257
        %v1266 = vadd.f32 %v1250, %v1258
        %v1267 = vadd.f32 %v1251, %v1259
        %v1268 = vadd.f32 %v1252, %v1260
        %v1269 = vadd.f32 %v1253, %v1261
        %v1270 = vadd.f32 %v1254, %v1262
        %v1271 = vmul.f32 %v1239, %v986
        %v1272 = vmul.f32 %v1240, %v990
        %v1273 = vmul.f32 %v1241, %v994
        %v1274 = vmul.f32 %v1242, %v998
        %v1275 = vmul.f32 %v1243, %v1002
        %v1276 = vmul.f32 %v1244, %v1006
        %v1277 = vmul.f32 %v1245, %v1010
        %v1278 = vmul.f32 %v1246, %v1014
        %v1279 = vadd.f32 %v1263, %v1271
        %v1280 = vadd.f32 %v1264, %v1272
        %v1281 = vadd.f32 %v1265, %v1273
        %v1282 = vadd.f32 %v1266, %v1274
        %v1283 = vadd.f32 %v1267, %v1275
        %v1284 = vadd.f32 %v1268, %v1276
        %v1285 = vadd.f32 %v1269, %v1277
        %v1286 = vadd.f32 %v1270, %v1278
        %1287 = vrot.lane.b32.xlu0 %v521, 64
        %v1288 = vpop.permute.xlu0 %1287
        %1289 = vrot.lane.b32.xlu0 %v681, 64
        %v1290 = vpop.permute.xlu0 %1289
        %1291 = vrot.lane.b32.xlu0 %v684, 64
        %v1292 = vpop.permute.xlu0 %1291
        %1293 = vrot.lane.b32.xlu0 %v687, 64
        %v1294 = vpop.permute.xlu0 %1293
        %v1299 = vcombine.low %v1288, %v1292
        %v1300 = vcombine.high %v1288, %v1292
        %v1302 = vunpack.c.l.s4 1983009808
        %v1303 = vunpack.c.0.s8 %v1302
        %v1304 = vlaneseq
        %v1305 = vshrl.u32 %v1304, 7
        %v1306 = vsub.s32 %v1303, %v1305
        %v1307 = vrot.slane %v1299, %v1306
        %v1309 = vunpack.c.l.s4 1983009808
        %v1310 = vunpack.c.0.s8 %v1309
        %v1311 = vlaneseq
        %v1312 = vshrl.u32 %v1311, 7
        %v1313 = vsub.s32 %v1310, %v1312
        %v1314 = vrot.slane %v1300, %v1313
        %v1315 = vcombine.low %v1290, %v1294
        %v1316 = vcombine.high %v1290, %v1294
        %v1318 = vunpack.c.l.s4 1983009808
        %v1319 = vunpack.c.0.s8 %v1318
        %v1320 = vlaneseq
        %v1321 = vshrl.u32 %v1320, 7
        %v1322 = vsub.s32 %v1319, %v1321
        %v1323 = vrot.slane %v1315, %v1322
        %v1325 = vunpack.c.l.s4 1983009808
        %v1326 = vunpack.c.0.s8 %v1325
        %v1327 = vlaneseq
        %v1328 = vshrl.u32 %v1327, 7
        %v1329 = vsub.s32 %v1326, %v1328
        %v1330 = vrot.slane %v1316, %v1329
        %v1331 = vcombine.low %v1307, %v1323
        %v1332 = vcombine.high %v1307, %v1323
        %v1334 = vunpack.c.l.s4 1934713408
        %v1335 = vunpack.c.0.s8 %v1334
        %v1336 = vlaneseq
        %v1337 = vshrl.u32 %v1336, 7
        %v1338 = vsub.s32 %v1335, %v1337
        %v1339 = vrot.slane %v1331, %v1338
        %v1341 = vunpack.c.l.s4 1934713408
        %v1342 = vunpack.c.0.s8 %v1341
        %v1343 = vlaneseq
        %v1344 = vshrl.u32 %v1343, 7
        %v1345 = vsub.s32 %v1342, %v1344
        %v1346 = vrot.slane %v1332, %v1345
        %v1347 = vcombine.low %v1314, %v1330
        %v1348 = vcombine.high %v1314, %v1330
        %v1350 = vunpack.c.l.s4 1934713408
        %v1351 = vunpack.c.0.s8 %v1350
        %v1352 = vlaneseq
        %v1353 = vshrl.u32 %v1352, 7
        %v1354 = vsub.s32 %v1351, %v1353
        %v1355 = vrot.slane %v1347, %v1354
        %v1357 = vunpack.c.l.s4 1934713408
        %v1358 = vunpack.c.0.s8 %v1357
        %v1359 = vlaneseq
        %v1360 = vshrl.u32 %v1359, 7
        %v1361 = vsub.s32 %v1358, %v1360
        %v1362 = vrot.slane %v1348, %v1361
        %v1363 = vcombine.high %v1339, 0.0
        %v1364 = vcombine.high %v1346, 0.0
        %v1365 = vcombine.high %v1355, 0.0
        %v1366 = vcombine.high %v1362, 0.0
        %v1367 = vcombine.low %v1039, %v1041
        %v1369 = vunpack.c.l.s4 1983009808
        %v1370 = vunpack.c.0.s8 %v1369
        %v1371 = vlaneseq
        %v1372 = vshrl.u32 %v1371, 7
        %v1373 = vsub.s32 %v1370, %v1372
        %v1374 = vrot.slane %v1367, %v1373
        %v1375 = vcombine.low %v1040, %v1042
        %v1377 = vunpack.c.l.s4 1983009808
        %v1378 = vunpack.c.0.s8 %v1377
        %v1379 = vlaneseq
        %v1380 = vshrl.u32 %v1379, 7
        %v1381 = vsub.s32 %v1378, %v1380
        %v1382 = vrot.slane %v1375, %v1381
        %v1383 = vcombine.low %v1043, %v1045
        %v1385 = vunpack.c.l.s4 1983009808
        %v1386 = vunpack.c.0.s8 %v1385
        %v1387 = vlaneseq
        %v1388 = vshrl.u32 %v1387, 7
        %v1389 = vsub.s32 %v1386, %v1388
        %v1390 = vrot.slane %v1383, %v1389
        %v1391 = vcombine.low %v1044, %v1046
        %v1393 = vunpack.c.l.s4 1983009808
        %v1394 = vunpack.c.0.s8 %v1393
        %v1395 = vlaneseq
        %v1396 = vshrl.u32 %v1395, 7
        %v1397 = vsub.s32 %v1394, %v1396
        %v1398 = vrot.slane %v1391, %v1397
        %v1399 = vcombine.low %v1374, %v1382
        %v1400 = vcombine.high %v1374, %v1382
        %v1402 = vunpack.c.l.s4 1934713408
        %v1403 = vunpack.c.0.s8 %v1402
        %v1404 = vlaneseq
        %v1405 = vshrl.u32 %v1404, 7
        %v1406 = vsub.s32 %v1403, %v1405
        %v1407 = vrot.slane %v1399, %v1406
        %v1409 = vunpack.c.l.s4 1934713408
        %v1410 = vunpack.c.0.s8 %v1409
        %v1411 = vlaneseq
        %v1412 = vshrl.u32 %v1411, 7
        %v1413 = vsub.s32 %v1410, %v1412
        %v1414 = vrot.slane %v1400, %v1413
        %v1415 = vcombine.low %v1390, %v1398
        %v1416 = vcombine.high %v1390, %v1398
        %v1418 = vunpack.c.l.s4 1934713408
        %v1419 = vunpack.c.0.s8 %v1418
        %v1420 = vlaneseq
        %v1421 = vshrl.u32 %v1420, 7
        %v1422 = vsub.s32 %v1419, %v1421
        %v1423 = vrot.slane %v1415, %v1422
        %v1425 = vunpack.c.l.s4 1934713408
        %v1426 = vunpack.c.0.s8 %v1425
        %v1427 = vlaneseq
        %v1428 = vshrl.u32 %v1427, 7
        %v1429 = vsub.s32 %v1426, %v1428
        %v1430 = vrot.slane %v1416, %v1429
        %v1431 = vcombine.low %v1407, %v1423
        %v1432 = vcombine.high %v1407, %v1423
        %v1433 = vcombine.low %v1414, %v1430
        %v1434 = vcombine.high %v1414, %v1430
        %v1435 = vpack.c.bf16 %v1431, %v1431
        %v1436 = vpack.c.bf16 %v1432, %v1432
        %v1437 = vpack.c.bf16 %v1433, %v1433
        %v1438 = vpack.c.bf16 %v1434, %v1434
        %vm1439 = vcmask 60416
        %1440 = vst.msk [vmem:[%s431] sm:$0xf] %vm1439, %v1435
        %1441 = vst.msk [vmem:[%s431 + $0x4] sm:$0xf] %vm1439, %v1436
        %1442 = vst.msk [vmem:[%s431 + $0x8] sm:$0xf] %vm1439, %v1437
        %1443 = vst.msk [vmem:[%s431 + $0xc] sm:$0xf] %vm1439, %v1438
        %v1444 = vcombine.low %v1279, %v1281
        %v1446 = vunpack.c.l.s4 1983009808
        %v1447 = vunpack.c.0.s8 %v1446
        %v1448 = vlaneseq
        %v1449 = vshrl.u32 %v1448, 7
        %v1450 = vsub.s32 %v1447, %v1449
        %v1451 = vrot.slane %v1444, %v1450
        %v1452 = vcombine.low %v1280, %v1282
        %v1454 = vunpack.c.l.s4 1983009808
        %v1455 = vunpack.c.0.s8 %v1454
        %v1456 = vlaneseq
        %v1457 = vshrl.u32 %v1456, 7
        %v1458 = vsub.s32 %v1455, %v1457
        %v1459 = vrot.slane %v1452, %v1458
        %v1460 = vcombine.low %v1283, %v1285
        %v1462 = vunpack.c.l.s4 1983009808
        %v1463 = vunpack.c.0.s8 %v1462
        %v1464 = vlaneseq
        %v1465 = vshrl.u32 %v1464, 7
        %v1466 = vsub.s32 %v1463, %v1465
        %v1467 = vrot.slane %v1460, %v1466
        %v1468 = vcombine.low %v1284, %v1286
        %v1470 = vunpack.c.l.s4 1983009808
        %v1471 = vunpack.c.0.s8 %v1470
        %v1472 = vlaneseq
        %v1473 = vshrl.u32 %v1472, 7
        %v1474 = vsub.s32 %v1471, %v1473
        %v1475 = vrot.slane %v1468, %v1474
        %v1476 = vcombine.low %v1451, %v1459
        %v1477 = vcombine.high %v1451, %v1459
        %v1479 = vunpack.c.l.s4 1934713408
        %v1480 = vunpack.c.0.s8 %v1479
        %v1481 = vlaneseq
        %v1482 = vshrl.u32 %v1481, 7
        %v1483 = vsub.s32 %v1480, %v1482
        %v1484 = vrot.slane %v1476, %v1483
        %v1486 = vunpack.c.l.s4 1934713408
        %v1487 = vunpack.c.0.s8 %v1486
        %v1488 = vlaneseq
        %v1489 = vshrl.u32 %v1488, 7
        %v1490 = vsub.s32 %v1487, %v1489
        %v1491 = vrot.slane %v1477, %v1490
        %v1492 = vcombine.low %v1467, %v1475
        %v1493 = vcombine.high %v1467, %v1475
        %v1495 = vunpack.c.l.s4 1934713408
        %v1496 = vunpack.c.0.s8 %v1495
        %v1497 = vlaneseq
        %v1498 = vshrl.u32 %v1497, 7
        %v1499 = vsub.s32 %v1496, %v1498
        %v1500 = vrot.slane %v1492, %v1499
        %v1502 = vunpack.c.l.s4 1934713408
        %v1503 = vunpack.c.0.s8 %v1502
        %v1504 = vlaneseq
        %v1505 = vshrl.u32 %v1504, 7
        %v1506 = vsub.s32 %v1503, %v1505
        %v1507 = vrot.slane %v1493, %v1506
        %v1508 = vcombine.low %v1484, %v1500
        %v1509 = vcombine.high %v1484, %v1500
        %v1510 = vcombine.low %v1491, %v1507
        %v1511 = vcombine.high %v1491, %v1507
        %v1512 = vpack.c.bf16 %v1508, %v1508
        %v1513 = vpack.c.bf16 %v1509, %v1509
        %v1514 = vpack.c.bf16 %v1510, %v1510
        %v1515 = vpack.c.bf16 %v1511, %v1511
        %1516 = vst.msk [vmem:[%s438] sm:$0xf] %vm1439, %v1512
        %1517 = vst.msk [vmem:[%s438 + $0x4] sm:$0xf] %vm1439, %v1513
        %1518 = vst.msk [vmem:[%s438 + $0x8] sm:$0xf] %vm1439, %v1514
        %1519 = vst.msk [vmem:[%s438 + $0xc] sm:$0xf] %vm1439, %v1515
        %v1520 = vcombine.low %v1339, %v1346
        %v1522 = vunpack.c.l.s4 1983009808
        %v1523 = vunpack.c.0.s8 %v1522
        %v1524 = vlaneseq
        %v1525 = vshrl.u32 %v1524, 7
        %v1526 = vsub.s32 %v1523, %v1525
        %v1527 = vrot.slane %v1520, %v1526
        %v1528 = vcombine.low %v1363, %v1364
        %v1530 = vunpack.c.l.s4 1983009808
        %v1531 = vunpack.c.0.s8 %v1530
        %v1532 = vlaneseq
        %v1533 = vshrl.u32 %v1532, 7
        %v1534 = vsub.s32 %v1531, %v1533
        %v1535 = vrot.slane %v1528, %v1534
        %v1536 = vcombine.low %v1355, %v1362
        %v1538 = vunpack.c.l.s4 1983009808
        %v1539 = vunpack.c.0.s8 %v1538
        %v1540 = vlaneseq
        %v1541 = vshrl.u32 %v1540, 7
        %v1542 = vsub.s32 %v1539, %v1541
        %v1543 = vrot.slane %v1536, %v1542
        %v1544 = vcombine.low %v1365, %v1366
        %v1546 = vunpack.c.l.s4 1983009808
        %v1547 = vunpack.c.0.s8 %v1546
        %v1548 = vlaneseq
        %v1549 = vshrl.u32 %v1548, 7
        %v1550 = vsub.s32 %v1547, %v1549
        %v1551 = vrot.slane %v1544, %v1550
        %v1552 = vcombine.low %v1527, %v1535
        %v1553 = vcombine.high %v1527, %v1535
        %v1555 = vunpack.c.l.s4 1934713408
        %v1556 = vunpack.c.0.s8 %v1555
        %v1557 = vlaneseq
        %v1558 = vshrl.u32 %v1557, 7
        %v1559 = vsub.s32 %v1556, %v1558
        %v1560 = vrot.slane %v1552, %v1559
        %v1562 = vunpack.c.l.s4 1934713408
        %v1563 = vunpack.c.0.s8 %v1562
        %v1564 = vlaneseq
        %v1565 = vshrl.u32 %v1564, 7
        %v1566 = vsub.s32 %v1563, %v1565
        %v1567 = vrot.slane %v1553, %v1566
        %v1568 = vcombine.low %v1543, %v1551
        %v1569 = vcombine.high %v1543, %v1551
        %v1571 = vunpack.c.l.s4 1934713408
        %v1572 = vunpack.c.0.s8 %v1571
        %v1573 = vlaneseq
        %v1574 = vshrl.u32 %v1573, 7
        %v1575 = vsub.s32 %v1572, %v1574
        %v1576 = vrot.slane %v1568, %v1575
        %v1578 = vunpack.c.l.s4 1934713408
        %v1579 = vunpack.c.0.s8 %v1578
        %v1580 = vlaneseq
        %v1581 = vshrl.u32 %v1580, 7
        %v1582 = vsub.s32 %v1579, %v1581
        %v1583 = vrot.slane %v1569, %v1582
        %v1584 = vcombine.low %v1560, %v1576
        %v1585 = vcombine.high %v1560, %v1576
        %v1586 = vcombine.low %v1567, %v1583
        %v1587 = vcombine.high %v1567, %v1583
        %v1588 = vpack.c.bf16 %v1584, %v1584
        %v1589 = vpack.c.bf16 %v1585, %v1585
        %v1590 = vpack.c.bf16 %v1586, %v1586
        %v1591 = vpack.c.bf16 %v1587, %v1587
        %1592 = vst.msk [vmem:[%s445] sm:$0xf] %vm1439, %v1588
        %1593 = vst.msk [vmem:[%s445 + $0x4] sm:$0xf] %vm1439, %v1589
        %1594 = vst.msk [vmem:[%s445 + $0x8] sm:$0xf] %vm1439, %v1590
        %1595 = vst.msk [vmem:[%s445 + $0xc] sm:$0xf] %vm1439, %v1591
        %s1596 = sand.u32 %s202, 1
        %s1597 = scalar_lea.sflag [#allocation4], %s1596
        %s1598 = sand.u32 %s202, 1
        %s1599 = smul.addr %s1598, 16
        %s1600 = scalar_lea.vmem [#allocation13], %s1599
        %s1601 = sand.u32 %s32, 1
        %s1602 = scalar_lea.sflag [#allocation15], %s1601
        %s1603 = sand.u32 %s230, 1
        %s1604 = smul.addr %s1603, 16
        %s1605 = scalar_lea.vmem [#allocation14], %s1604
        %s1606 = sand.u32 %s32, 1
        %s1607 = scalar_lea.sflag [#allocation15], %s1606
        %s1608 = sand.u32 %s258, 1
        %s1609 = smul.addr %s1608, 16
        %s1610 = scalar_lea.vmem [#allocation16], %s1609
        // Predicated region
        $region69: #{tpu_custom_call.1} parent=43 // pred_check
          %p1611 = pneg %p212
        $region70: #{tpu_custom_call.1} parent=43 // pred_check_branch
          %1613 = sbr.rel (%p1611) target = $region72
        $region71: #{tpu_custom_call.1} parent=43 // pred_region
          %s1615 = ssub.s32 256, 256
          %1616 = vsyncadd %s1597, %s1615
          %s1617 = smul.addr %s36, 4
          %s1618 = sadd.s32 %s37, %s1617
          %s1619 = smul.addr %s1618, 64
          %s1620 = scalar_lea.hbm %s6, %s1619
          %s1621 = sshll.u32 %s1600, 4
          %s1622 = int_to_ptr.vmem [resolvable:$true] %s1621
          %1627 = dma.vmem_to_hbm [thread:$0]  %s1622, 256, %s1620, %s1597, 64, 64, 4
        $region72: #{tpu_custom_call.1} parent=43 // pred_fallthru
          _
        // Predicated region
        $region73: #{tpu_custom_call.1} parent=43 // pred_check
          %p1628 = pneg %p240
        $region74: #{tpu_custom_call.1} parent=43 // pred_check_branch
          %1630 = sbr.rel (%p1628) target = $region76
        $region75: #{tpu_custom_call.1} parent=43 // pred_region
          %s1632 = ssub.s32 256, 256
          %1633 = vsyncadd %s1602, %s1632
          %s1634 = smul.addr %s36, 4
          %s1635 = sadd.s32 %s37, %s1634
          %s1636 = smul.addr %s1635, 64
          %s1637 = scalar_lea.hbm %s7, %s1636
          %s1638 = sshll.u32 %s1605, 4
          %s1639 = int_to_ptr.vmem [resolvable:$true] %s1638
          %1644 = dma.vmem_to_hbm [thread:$0]  %s1639, 256, %s1637, %s1602, 64, 64, 4
        $region76: #{tpu_custom_call.1} parent=43 // pred_fallthru
          _
        // Predicated region
        $region77: #{tpu_custom_call.1} parent=43 // pred_check
          %p1645 = pneg %p268
        $region78: #{tpu_custom_call.1} parent=43 // pred_check_branch
          %1647 = sbr.rel (%p1645) target = $region80
        $region79: #{tpu_custom_call.1} parent=43 // pred_region
          %s1649 = ssub.s32 256, 256
          %1650 = vsyncadd %s1607, %s1649
          %s1651 = smul.addr %s36, 4
          %s1652 = sadd.s32 %s37, %s1651
          %s1653 = smul.addr %s1652, 64
          %s1654 = scalar_lea.hbm %s8, %s1653
          %s1655 = sshll.u32 %s1610, 4
          %s1656 = int_to_ptr.vmem [resolvable:$true] %s1655
          %1661 = dma.vmem_to_hbm [thread:$0]  %s1656, 256, %s1654, %s1607, 64, 64, 4
        $region80: #{tpu_custom_call.1} parent=43 // pred_fallthru
          _
      $region44: #{tpu_custom_call.1} parent=5 // pred_fallthru
        _
      %p1662 = scmp.le.s32.totalorder 2, %s27
      // Predicated region
      $region81: #{tpu_custom_call.1} parent=5 // pred_check
        %p1663 = pneg %p1662
      $region82: #{tpu_custom_call.1} parent=5 // pred_check_branch
        %1665 = sbr.rel (%p1663) target = $region84
      $region83: #{tpu_custom_call.1} parent=5 // pred_region
        %s1666 = ssub.s32 %s27, 2
        // Predicated region
        $region85: #{tpu_custom_call.1} parent=83 // pred_check
          %p1667 = pneg %p218
        $region86: #{tpu_custom_call.1} parent=83 // pred_check_branch
          %1669 = sbr.rel (%p1667) target = $region88
        $region87: #{tpu_custom_call.1} parent=83 // pred_region
          %s1670 = sand.u32 %s203, 1
          %s1671 = scalar_lea.sflag [#allocation4], %s1670
          %s1672 = sand.u32 %s203, 1
          %s1673 = smul.addr %s1672, 16
          %s1674 = scalar_lea.vmem [#allocation13], %s1673
          %1675 = dma.done %s1671, 256
        $region88: #{tpu_custom_call.1} parent=83 // pred_fallthru
          _
        // Predicated region
        $region89: #{tpu_custom_call.1} parent=83 // pred_check
          %p1676 = pneg %p246
        $region90: #{tpu_custom_call.1} parent=83 // pred_check_branch
          %1678 = sbr.rel (%p1676) target = $region92
        $region91: #{tpu_custom_call.1} parent=83 // pred_region
          %s1679 = sand.u32 %s33, 1
          %s1680 = scalar_lea.sflag [#allocation15], %s1679
          %s1681 = sand.u32 %s231, 1
          %s1682 = smul.addr %s1681, 16
          %s1683 = scalar_lea.vmem [#allocation14], %s1682
          %1684 = dma.done %s1680, 256
        $region92: #{tpu_custom_call.1} parent=83 // pred_fallthru
          _
        // Predicated region
        $region93: #{tpu_custom_call.1} parent=83 // pred_check
          %p1685 = pneg %p274
        $region94: #{tpu_custom_call.1} parent=83 // pred_check_branch
          %1687 = sbr.rel (%p1685) target = $region96
        $region95: #{tpu_custom_call.1} parent=83 // pred_region
          %s1688 = sand.u32 %s33, 1
          %s1689 = scalar_lea.sflag [#allocation15], %s1688
          %s1690 = sand.u32 %s259, 1
          %s1691 = smul.addr %s1690, 16
          %s1692 = scalar_lea.vmem [#allocation16], %s1691
          %1693 = dma.done %s1689, 256
        $region96: #{tpu_custom_call.1} parent=83 // pred_fallthru
          _
      $region84: #{tpu_custom_call.1} parent=5 // pred_fallthru
        _
    $region6: #{tpu_custom_call.1} parent=1 // loop_footer
      %s31 = sadd.s32 1, %s27
    $region7: #{tpu_custom_call.1} parent=1 // loop_footer_branch
      %26 = sbr.rel target = $region3
    $region8: #{tpu_custom_call.1} parent=1 // loop_exit
      _
    %1694 = vsyncpa [#allocation3], 1
    %s1695 = scalar_lea.sflag [#allocation3], 1
    %1696 = vsyncpa %s1695, 1
    %1697 = vsyncpa [#allocation6], 1
    %1698 = vsyncpa [#allocation9], 1
    %1699 = vsyncpa [#allocation12], 1
    %1700 = vsyncpa [#allocation4], 1
    %s1701 = scalar_lea.sflag [#allocation4], 1
    %1702 = vsyncpa %s1701, 1
    %1703 = vsyncpa [#allocation15], 1
    %s1704 = scalar_lea.sflag [#allocation15], 1
    %1705 = vsyncpa %s1704, 1

</llo_original>
